<compile_context>
chip_gen: v7x
topology: tpu7x:2x2x1
jax: 0.10.0
libtpu: 0.0.40
codegen_flags: <defaults>
</compile_context>

<pallas_src>
import functools

import jax
import jax.numpy as jnp
from jax.experimental import pallas as pl
from jax.experimental.pallas import tpu as pltpu


def _round_up(v, m):
    return ((v + m - 1) // m) * m


def _mlp_kernel(x_ref, w1_ref, g_ref, beta_ref, w2_ref, b2_ref, w3_ref, b3_ref,
                out_ref, sum_ref, sumsq_ref, scale_ref, shift_ref,
                *, n_rows, eps):
    p = pl.program_id(0)   # 0 = BN-stats pass, 1 = normalize + MLP pass
    t = pl.program_id(1)   # batch tile index

    # ---- pass 0, first tile: zero the stat accumulators --------------------
    @pl.when(jnp.logical_and(p == 0, t == 0))
    def _():
        sum_ref[...] = jnp.zeros_like(sum_ref)
        sumsq_ref[...] = jnp.zeros_like(sumsq_ref)

    # ---- pass 0: accumulate per-feature sum / sum-of-squares of Z1 ---------
    # Padded batch rows are all-zero and there is no pre-BN bias, so they
    # contribute exactly 0 to both accumulators.
    @pl.when(p == 0)
    def _():
        z1 = jnp.dot(x_ref[...], w1_ref[...],
                     preferred_element_type=jnp.float32)
        sum_ref[...] += jnp.sum(z1, axis=0, keepdims=True)
        sumsq_ref[...] += jnp.sum(z1 * z1, axis=0, keepdims=True)

    # ---- pass 1, first tile: fold BN into per-feature scale / shift --------
    @pl.when(jnp.logical_and(p == 1, t == 0))
    def _():
        inv_n = 1.0 / n_rows                       # real batch size (no pad)
        mean = sum_ref[...] * inv_n
        var = jnp.maximum(sumsq_ref[...] * inv_n - mean * mean, 0.0)  # biased
        inv_std = jax.lax.rsqrt(var + eps)         # EUP, effectively free
        scale = inv_std * g_ref[...]
        scale_ref[...] = scale
        shift_ref[...] = beta_ref[...] - mean * scale

    # ---- pass 1: normalized MLP on this batch tile --------------------------
    @pl.when(p == 1)
    def _():
        z1 = jnp.dot(x_ref[...], w1_ref[...],
                     preferred_element_type=jnp.float32)
        a1 = jnp.maximum(z1 * scale_ref[...] + shift_ref[...], 0.0)
        z2 = jnp.dot(a1.astype(jnp.bfloat16), w2_ref[...],
                     preferred_element_type=jnp.float32) + b2_ref[...]
        a2 = jnp.maximum(z2, 0.0)
        z3 = jnp.dot(a2.astype(jnp.bfloat16), w3_ref[...],
                     preferred_element_type=jnp.float32) + b3_ref[...]
        out_ref[...] = z3.astype(out_ref.dtype)


def mlp_forward(x, params, *, block_rows=512):
    """x: (N, n0) float32. params: dict of Linear/BN parameters (PyTorch layout)."""
    N, n0 = x.shape
    n1 = params["w1"].shape[0]
    n2 = params["w2"].shape[0]
    n3 = params["w3"].shape[0]

    # Lane-dense padding of all feature dims to multiples of 128.
    n0p, n1p, n2p, n3p = (_round_up(d, 128) for d in (n0, n1, n2, n3))

    # Batch tiling: tile rows (multiple of 8), pad N up to a whole tile count.
    tn = _round_up(min(block_rows, N), 8)
    n_pad = _round_up(N, tn)
    n_tiles = n_pad // tn

    def pad2(a, rows, cols):
        return jnp.pad(a, ((0, rows - a.shape[0]), (0, cols - a.shape[1])))

    # bf16 matmul operands (halves DMA bytes, native MXU dtype); f32 accum
    # happens inside the kernel via preferred_element_type.
    xp = pad2(x, n_pad, n0p).astype(jnp.bfloat16)
    w1t = pad2(params["w1"].T, n0p, n1p).astype(jnp.bfloat16)
    w2t = pad2(params["w2"].T, n1p, n2p).astype(jnp.bfloat16)
    w3t = pad2(params["w3"].T, n2p, n3p).astype(jnp.bfloat16)
    # params["b1"] is intentionally NOT passed: a pre-BatchNorm bias is
    # cancelled exactly by the batch-mean subtraction.
    gamma = pad2(params["gamma"][None, :].astype(jnp.float32), 1, n1p)
    beta = pad2(params["beta"][None, :].astype(jnp.float32), 1, n1p)
    b2 = pad2(params["b2"][None, :].astype(jnp.float32), 1, n2p)
    b3 = pad2(params["b3"][None, :].astype(jnp.float32), 1, n3p)

    row_spec = pl.BlockSpec((tn, n0p), lambda p, t: (t, 0))
    const = lambda a: pl.BlockSpec(a.shape, lambda p, t: (0, 0))  # VMEM-resident

    kernel = functools.partial(_mlp_kernel, n_rows=float(N), eps=1e-5)

    out_padded = pl.pallas_call(
        kernel,
        out_shape=jax.ShapeDtypeStruct((n_pad, n3p), jnp.float32),
        grid_spec=pltpu.PrefetchScalarGridSpec(
            num_scalar_prefetch=0,
            grid=(2, n_tiles),          # (pass, batch tile); pass is outermost
            in_specs=[row_spec,
                      const(w1t), const(gamma), const(beta),
                      const(w2t), const(b2), const(w3t), const(b3)],
            # p * t parks the output block at tile 0 during the stats pass so
            # nothing is written back to HBM until pass 1 produces real data.
            out_specs=pl.BlockSpec((tn, n3p), lambda p, t: (p * t, 0)),
            scratch_shapes=[pltpu.VMEM((1, n1p), jnp.float32)] * 4,
        ),
        compiler_params=pltpu.CompilerParams(
            # Both axes touch the shared BN-stat scratch -> must be arbitrary.
            # (For v7x 2-TC parallelism one would split this into a stats call
            #  and a fully "parallel" normalize/MLP call.)
            dimension_semantics=("arbitrary", "arbitrary"),
            vmem_limit_bytes=32 * 1024 * 1024,  # explicit budget, ample headroom
        ),
    )(xp, w1t, gamma, beta, w2t, b2, w3t, b3)

    return out_padded[:N, :n3]


def make_params(key, n0, n1, n2, n3):
    """Deterministic synthetic init matching nn.Linear / nn.BatchNorm1d shapes."""
    ks = jax.random.split(key, 6)

    def linear(kw, kb, fan_in, fan_out):
        bound = 1.0 / jnp.sqrt(fan_in)
        w = jax.random.uniform(kw, (fan_out, fan_in), jnp.float32, -bound, bound)
        b = jax.random.uniform(kb, (fan_out,), jnp.float32, -bound, bound)
        return w, b

    w1, b1 = linear(ks[0], ks[1], n0, n1)
    w2, b2 = linear(ks[2], ks[3], n1, n2)
    w3, b3 = linear(ks[4], ks[5], n2, n3)
    return {
        "w1": w1, "b1": b1,
        "gamma": jnp.ones((n1,), jnp.float32),   # BN affine defaults
        "beta": jnp.zeros((n1,), jnp.float32),
        "w2": w2, "b2": b2,
        "w3": w3, "b3": b3,
    }


def reference_forward(x, p):
    """Pure-JAX f32 reference of the PyTorch forward (training-mode BN), incl. b1."""
    eps = 1e-5
    z1 = x @ p["w1"].T + p["b1"]
    mean = jnp.mean(z1, axis=0)
    var = jnp.mean((z1 - mean) ** 2, axis=0)
    z1 = (z1 - mean) / jnp.sqrt(var + eps) * p["gamma"] + p["beta"]
    a1 = jnp.maximum(z1, 0.0)
    a2 = jnp.maximum(a1 @ p["w2"].T + p["b2"], 0.0)
    return a2 @ p["w3"].T + p["b3"]


if __name__ == "__main__":
    n0, n1, n2, n3 = 32, 64, 32, 16
    batch = 300   # not a multiple of the row tile -> exercises batch padding

    key = jax.random.PRNGKey(0)
    kx, kp = jax.random.split(key)
    x = jax.random.normal(kx, (batch, n0), jnp.float32)
    params = make_params(kp, n0, n1, n2, n3)

    # block_rows=128 -> 3 batch tiles, exercising the cross-tile BN statistics.
    out = mlp_forward(x, params, block_rows=128)
    jax.block_until_ready(out)

    ref = reference_forward(x, params)
    assert out.shape == (batch, n3)
    # bf16 MXU operands with f32 accumulation -> loose tolerance vs f32 reference.
    assert jnp.allclose(out, ref, atol=5e-2, rtol=5e-2), "mismatch vs reference"

    print("KERNEL_OK")
</pallas_src>

<mosaic_0001>
module attributes {stable_mosaic.version = 11 : i64} {
  func.func @_mlp_kernel(%arg0: i32, %arg1: i32, %arg2: memref<128x128xbf16, #tpu.memory_space<vmem>>, %arg3: memref<128x128xbf16, #tpu.memory_space<vmem>>, %arg4: memref<1x128xf32, #tpu.memory_space<vmem>>, %arg5: memref<1x128xf32, #tpu.memory_space<vmem>>, %arg6: memref<128x128xbf16, #tpu.memory_space<vmem>>, %arg7: memref<1x128xf32, #tpu.memory_space<vmem>>, %arg8: memref<128x128xbf16, #tpu.memory_space<vmem>>, %arg9: memref<1x128xf32, #tpu.memory_space<vmem>>, %arg10: memref<128x128xf32, #tpu.memory_space<vmem>>, %arg11: memref<1x128xf32, #tpu.memory_space<vmem>>, %arg12: memref<1x128xf32, #tpu.memory_space<vmem>>, %arg13: memref<1x128xf32, #tpu.memory_space<vmem>>, %arg14: memref<1x128xf32, #tpu.memory_space<vmem>>) attributes {dimension_semantics = [#tpu.dimension_semantics<arbitrary>, #tpu.dimension_semantics<arbitrary>], iteration_bounds = array<i64: 2, 3>, scalar_prefetch = 0 : i64, scratch_operands = 4 : i64, tpu.core_type = #tpu.core_type<tc>, window_params = [{transform_indices = @transform_0, window_bounds = array<i64: 128, 128>}, {pipeline_mode = #tpu.pipeline_mode<synchronous>, transform_indices = @transform_1, window_bounds = array<i64: 128, 128>}, {pipeline_mode = #tpu.pipeline_mode<synchronous>, transform_indices = @transform_2, window_bounds = array<i64: 1, 128>}, {pipeline_mode = #tpu.pipeline_mode<synchronous>, transform_indices = @transform_3, window_bounds = array<i64: 1, 128>}, {pipeline_mode = #tpu.pipeline_mode<synchronous>, transform_indices = @transform_4, window_bounds = array<i64: 128, 128>}, {pipeline_mode = #tpu.pipeline_mode<synchronous>, transform_indices = @transform_5, window_bounds = array<i64: 1, 128>}, {pipeline_mode = #tpu.pipeline_mode<synchronous>, transform_indices = @transform_6, window_bounds = array<i64: 128, 128>}, {pipeline_mode = #tpu.pipeline_mode<synchronous>, transform_indices = @transform_7, window_bounds = array<i64: 1, 128>}, {transform_indices = @transform_8, window_bounds = array<i64: 128, 128>}]} {
    %c0_i32 = arith.constant 0 : i32
    %0 = arith.cmpi eq, %arg0, %c0_i32 : i32
    %c0_i32_0 = arith.constant 0 : i32
    %1 = arith.cmpi eq, %arg1, %c0_i32_0 : i32
    %2 = arith.andi %0, %1 : i1
    %3 = arith.extui %2 : i1 to i32
    %c0_i32_1 = arith.constant 0 : i32
    %4 = arith.cmpi ne, %3, %c0_i32_1 : i32
    scf.if %4 {
      %cst = arith.constant 0.000000e+00 : f32
      %16 = vector.broadcast %cst : f32 to vector<1x128xf32>
      %c0 = arith.constant 0 : index
      %c0_8 = arith.constant 0 : index
      %17 = vector.load %arg11[%c0, %c0_8] : memref<1x128xf32, #tpu.memory_space<vmem>>, vector<1x128xf32>
      tpu.vector_store %arg11[%c0, %c0_8], %16 {strides = array<i32>} : memref<1x128xf32, #tpu.memory_space<vmem>>, vector<1x128xf32>,
      %cst_9 = arith.constant 0.000000e+00 : f32
      %18 = vector.broadcast %cst_9 : f32 to vector<1x128xf32>
      %c0_10 = arith.constant 0 : index
      %c0_11 = arith.constant 0 : index
      %19 = vector.load %arg12[%c0_10, %c0_11] : memref<1x128xf32, #tpu.memory_space<vmem>>, vector<1x128xf32>
      tpu.vector_store %arg12[%c0_10, %c0_11], %18 {strides = array<i32>} : memref<1x128xf32, #tpu.memory_space<vmem>>, vector<1x128xf32>,
    } else {
    }
    %c0_i32_2 = arith.constant 0 : i32
    %5 = arith.cmpi eq, %arg0, %c0_i32_2 : i32
    %6 = arith.extui %5 : i1 to i32
    %c0_i32_3 = arith.constant 0 : i32
    %7 = arith.cmpi ne, %6, %c0_i32_3 : i32
    scf.if %7 {
      %c0 = arith.constant 0 : index
      %c0_8 = arith.constant 0 : index
      %16 = vector.load %arg2[%c0, %c0_8] : memref<128x128xbf16, #tpu.memory_space<vmem>>, vector<128x128xbf16>
      %c0_9 = arith.constant 0 : index
      %c0_10 = arith.constant 0 : index
      %17 = vector.load %arg3[%c0_9, %c0_10] : memref<128x128xbf16, #tpu.memory_space<vmem>>, vector<128x128xbf16>
      %cst = arith.constant dense<0.000000e+00> : vector<128x128xf32>
      %18 = tpu.matmul %16, %17, %cst {dimension_numbers = #tpu.dot_dimension_numbers<[1], [0], [0], [1], [0, 0, 1, 1], [], []>} : vector<128x128xbf16>, vector<128x128xbf16>, vector<128x128xf32> -> vector<128x128xf32>
      %c0_11 = arith.constant 0 : index
      %c0_12 = arith.constant 0 : index
      %19 = vector.load %arg11[%c0_11, %c0_12] : memref<1x128xf32, #tpu.memory_space<vmem>>, vector<1x128xf32>
      %cst_13 = arith.constant dense<0.000000e+00> : vector<128xf32>
      %20 = vector.multi_reduction <add>, %18, %cst_13 [0] : vector<128x128xf32> to vector<128xf32>
      %21 = vector.shape_cast %20 : vector<128xf32> to vector<1x128xf32>
      %22 = arith.addf %19, %21 : vector<1x128xf32>
      %c0_14 = arith.constant 0 : index
      %c0_15 = arith.constant 0 : index
      %23 = vector.load %arg11[%c0_14, %c0_15] : memref<1x128xf32, #tpu.memory_space<vmem>>, vector<1x128xf32>
      tpu.vector_store %arg11[%c0_14, %c0_15], %22 {strides = array<i32>} : memref<1x128xf32, #tpu.memory_space<vmem>>, vector<1x128xf32>,
      %c0_16 = arith.constant 0 : index
      %c0_17 = arith.constant 0 : index
      %24 = vector.load %arg12[%c0_16, %c0_17] : memref<1x128xf32, #tpu.memory_space<vmem>>, vector<1x128xf32>
      %25 = arith.mulf %18, %18 : vector<128x128xf32>
      %cst_18 = arith.constant dense<0.000000e+00> : vector<128xf32>
      %26 = vector.multi_reduction <add>, %25, %cst_18 [0] : vector<128x128xf32> to vector<128xf32>
      %27 = vector.shape_cast %26 : vector<128xf32> to vector<1x128xf32>
      %28 = arith.addf %24, %27 : vector<1x128xf32>
      %c0_19 = arith.constant 0 : index
      %c0_20 = arith.constant 0 : index
      %29 = vector.load %arg12[%c0_19, %c0_20] : memref<1x128xf32, #tpu.memory_space<vmem>>, vector<1x128xf32>
      tpu.vector_store %arg12[%c0_19, %c0_20], %28 {strides = array<i32>} : memref<1x128xf32, #tpu.memory_space<vmem>>, vector<1x128xf32>,
    } else {
    }
    %c1_i32 = arith.constant 1 : i32
    %8 = arith.cmpi eq, %arg0, %c1_i32 : i32
    %c0_i32_4 = arith.constant 0 : i32
    %9 = arith.cmpi eq, %arg1, %c0_i32_4 : i32
    %10 = arith.andi %8, %9 : i1
    %11 = arith.extui %10 : i1 to i32
    %c0_i32_5 = arith.constant 0 : i32
    %12 = arith.cmpi ne, %11, %c0_i32_5 : i32
    scf.if %12 {
      %c0 = arith.constant 0 : index
      %c0_8 = arith.constant 0 : index
      %16 = vector.load %arg11[%c0, %c0_8] : memref<1x128xf32, #tpu.memory_space<vmem>>, vector<1x128xf32>
      %cst = arith.constant 0.00333333341 : f32
      %17 = vector.broadcast %cst : f32 to vector<1x128xf32>
      %18 = arith.mulf %16, %17 : vector<1x128xf32>
      %c0_9 = arith.constant 0 : index
      %c0_10 = arith.constant 0 : index
      %19 = vector.load %arg12[%c0_9, %c0_10] : memref<1x128xf32, #tpu.memory_space<vmem>>, vector<1x128xf32>
      %cst_11 = arith.constant 0.00333333341 : f32
      %20 = vector.broadcast %cst_11 : f32 to vector<1x128xf32>
      %21 = arith.mulf %19, %20 : vector<1x128xf32>
      %22 = arith.mulf %18, %18 : vector<1x128xf32>
      %23 = arith.subf %21, %22 : vector<1x128xf32>
      %cst_12 = arith.constant 0.000000e+00 : f32
      %24 = vector.broadcast %cst_12 : f32 to vector<1x128xf32>
      %25 = arith.maximumf %23, %24 : vector<1x128xf32>
      %cst_13 = arith.constant 9.99999974E-6 : f32
      %26 = vector.broadcast %cst_13 : f32 to vector<1x128xf32>
      %27 = arith.addf %25, %26 : vector<1x128xf32>
      %28 = math.rsqrt %27 : vector<1x128xf32>
      %c0_14 = arith.constant 0 : index
      %c0_15 = arith.constant 0 : index
      %29 = vector.load %arg4[%c0_14, %c0_15] : memref<1x128xf32, #tpu.memory_space<vmem>>, vector<1x128xf32>
      %30 = arith.mulf %28, %29 : vector<1x128xf32>
      %c0_16 = arith.constant 0 : index
      %c0_17 = arith.constant 0 : index
      %31 = vector.load %arg13[%c0_16, %c0_17] : memref<1x128xf32, #tpu.memory_space<vmem>>, vector<1x128xf32>
      tpu.vector_store %arg13[%c0_16, %c0_17], %30 {strides = array<i32>} : memref<1x128xf32, #tpu.memory_space<vmem>>, vector<1x128xf32>,
      %c0_18 = arith.constant 0 : index
      %c0_19 = arith.constant 0 : index
      %32 = vector.load %arg5[%c0_18, %c0_19] : memref<1x128xf32, #tpu.memory_space<vmem>>, vector<1x128xf32>
      %33 = arith.mulf %18, %30 : vector<1x128xf32>
      %34 = arith.subf %32, %33 : vector<1x128xf32>
      %c0_20 = arith.constant 0 : index
      %c0_21 = arith.constant 0 : index
      %35 = vector.load %arg14[%c0_20, %c0_21] : memref<1x128xf32, #tpu.memory_space<vmem>>, vector<1x128xf32>
      tpu.vector_store %arg14[%c0_20, %c0_21], %34 {strides = array<i32>} : memref<1x128xf32, #tpu.memory_space<vmem>>, vector<1x128xf32>,
    } else {
    }
    %c1_i32_6 = arith.constant 1 : i32
    %13 = arith.cmpi eq, %arg0, %c1_i32_6 : i32
    %14 = arith.extui %13 : i1 to i32
    %c0_i32_7 = arith.constant 0 : i32
    %15 = arith.cmpi ne, %14, %c0_i32_7 : i32
    scf.if %15 {
      %c0 = arith.constant 0 : index
      %c0_8 = arith.constant 0 : index
      %16 = vector.load %arg2[%c0, %c0_8] : memref<128x128xbf16, #tpu.memory_space<vmem>>, vector<128x128xbf16>
      %c0_9 = arith.constant 0 : index
      %c0_10 = arith.constant 0 : index
      %17 = vector.load %arg3[%c0_9, %c0_10] : memref<128x128xbf16, #tpu.memory_space<vmem>>, vector<128x128xbf16>
      %cst = arith.constant dense<0.000000e+00> : vector<128x128xf32>
      %18 = tpu.matmul %16, %17, %cst {dimension_numbers = #tpu.dot_dimension_numbers<[1], [0], [0], [1], [0, 0, 1, 1], [], []>} : vector<128x128xbf16>, vector<128x128xbf16>, vector<128x128xf32> -> vector<128x128xf32>
      %c0_11 = arith.constant 0 : index
      %c0_12 = arith.constant 0 : index
      %19 = vector.load %arg13[%c0_11, %c0_12] : memref<1x128xf32, #tpu.memory_space<vmem>>, vector<1x128xf32>
      %20 = vector.broadcast %19 : vector<1x128xf32> to vector<128x128xf32>
      %21 = arith.mulf %18, %20 : vector<128x128xf32>
      %c0_13 = arith.constant 0 : index
      %c0_14 = arith.constant 0 : index
      %22 = vector.load %arg14[%c0_13, %c0_14] : memref<1x128xf32, #tpu.memory_space<vmem>>, vector<1x128xf32>
      %23 = vector.broadcast %22 : vector<1x128xf32> to vector<128x128xf32>
      %24 = arith.addf %21, %23 : vector<128x128xf32>
      %cst_15 = arith.constant 0.000000e+00 : f32
      %25 = vector.broadcast %cst_15 : f32 to vector<128x128xf32>
      %26 = arith.maximumf %24, %25 : vector<128x128xf32>
      %27 = arith.truncf %26 : vector<128x128xf32> to vector<128x128xbf16>
      %c0_16 = arith.constant 0 : index
      %c0_17 = arith.constant 0 : index
      %28 = vector.load %arg6[%c0_16, %c0_17] : memref<128x128xbf16, #tpu.memory_space<vmem>>, vector<128x128xbf16>
      %cst_18 = arith.constant dense<0.000000e+00> : vector<128x128xf32>
      %29 = tpu.matmul %27, %28, %cst_18 {dimension_numbers = #tpu.dot_dimension_numbers<[1], [0], [0], [1], [0, 0, 1, 1], [], []>} : vector<128x128xbf16>, vector<128x128xbf16>, vector<128x128xf32> -> vector<128x128xf32>
      %c0_19 = arith.constant 0 : index
      %c0_20 = arith.constant 0 : index
      %30 = vector.load %arg7[%c0_19, %c0_20] : memref<1x128xf32, #tpu.memory_space<vmem>>, vector<1x128xf32>
      %31 = vector.broadcast %30 : vector<1x128xf32> to vector<128x128xf32>
      %32 = arith.addf %29, %31 : vector<128x128xf32>
      %cst_21 = arith.constant 0.000000e+00 : f32
      %33 = vector.broadcast %cst_21 : f32 to vector<128x128xf32>
      %34 = arith.maximumf %32, %33 : vector<128x128xf32>
      %35 = arith.truncf %34 : vector<128x128xf32> to vector<128x128xbf16>
      %c0_22 = arith.constant 0 : index
      %c0_23 = arith.constant 0 : index
      %36 = vector.load %arg8[%c0_22, %c0_23] : memref<128x128xbf16, #tpu.memory_space<vmem>>, vector<128x128xbf16>
      %cst_24 = arith.constant dense<0.000000e+00> : vector<128x128xf32>
      %37 = tpu.matmul %35, %36, %cst_24 {dimension_numbers = #tpu.dot_dimension_numbers<[1], [0], [0], [1], [0, 0, 1, 1], [], []>} : vector<128x128xbf16>, vector<128x128xbf16>, vector<128x128xf32> -> vector<128x128xf32>
      %c0_25 = arith.constant 0 : index
      %c0_26 = arith.constant 0 : index
      %38 = vector.load %arg9[%c0_25, %c0_26] : memref<1x128xf32, #tpu.memory_space<vmem>>, vector<1x128xf32>
      %39 = vector.broadcast %38 : vector<1x128xf32> to vector<128x128xf32>
      %40 = arith.addf %37, %39 : vector<128x128xf32>
      %c0_27 = arith.constant 0 : index
      %c0_28 = arith.constant 0 : index
      %41 = vector.load %arg10[%c0_27, %c0_28] : memref<128x128xf32, #tpu.memory_space<vmem>>, vector<128x128xf32>
      tpu.vector_store %arg10[%c0_27, %c0_28], %40 {strides = array<i32>} : memref<128x128xf32, #tpu.memory_space<vmem>>, vector<128x128xf32>,
    } else {
    }
    return
  }
  func.func @transform_0(%arg0: i32, %arg1: i32) -> (i32, i32) {
    %c0_i32 = arith.constant 0 : i32
    %c0_i32_0 = arith.constant 0 : i32
    return %arg1, %c0_i32 : i32, i32
  }
  func.func @transform_1(%arg0: i32, %arg1: i32) -> (i32, i32) {
    %c0_i32 = arith.constant 0 : i32
    %c0_i32_0 = arith.constant 0 : i32
    %c0_i32_1 = arith.constant 0 : i32
    return %c0_i32, %c0_i32_0 : i32, i32
  }
  func.func @transform_2(%arg0: i32, %arg1: i32) -> (i32, i32) {
    %c0_i32 = arith.constant 0 : i32
    %c0_i32_0 = arith.constant 0 : i32
    %c0_i32_1 = arith.constant 0 : i32
    return %c0_i32, %c0_i32_0 : i32, i32
  }
  func.func @transform_3(%arg0: i32, %arg1: i32) -> (i32, i32) {
    %c0_i32 = arith.constant 0 : i32
    %c0_i32_0 = arith.constant 0 : i32
    %c0_i32_1 = arith.constant 0 : i32
    return %c0_i32, %c0_i32_0 : i32, i32
  }
  func.func @transform_4(%arg0: i32, %arg1: i32) -> (i32, i32) {
    %c0_i32 = arith.constant 0 : i32
    %c0_i32_0 = arith.constant 0 : i32
    %c0_i32_1 = arith.constant 0 : i32
    return %c0_i32, %c0_i32_0 : i32, i32
  }
  func.func @transform_5(%arg0: i32, %arg1: i32) -> (i32, i32) {
    %c0_i32 = arith.constant 0 : i32
    %c0_i32_0 = arith.constant 0 : i32
    %c0_i32_1 = arith.constant 0 : i32
    return %c0_i32, %c0_i32_0 : i32, i32
  }
  func.func @transform_6(%arg0: i32, %arg1: i32) -> (i32, i32) {
    %c0_i32 = arith.constant 0 : i32
    %c0_i32_0 = arith.constant 0 : i32
    %c0_i32_1 = arith.constant 0 : i32
    return %c0_i32, %c0_i32_0 : i32, i32
  }
  func.func @transform_7(%arg0: i32, %arg1: i32) -> (i32, i32) {
    %c0_i32 = arith.constant 0 : i32
    %c0_i32_0 = arith.constant 0 : i32
    %c0_i32_1 = arith.constant 0 : i32
    return %c0_i32, %c0_i32_0 : i32, i32
  }
  func.func @transform_8(%arg0: i32, %arg1: i32) -> (i32, i32) {
    %0 = arith.muli %arg0, %arg1 : i32
    %c0_i32 = arith.constant 0 : i32
    %c0_i32_0 = arith.constant 0 : i32
    return %0, %c0_i32 : i32, i32
  }
}

</mosaic_0001>

<llo_original>
// kernel: tpu_custom_call.1
$region0: #{tpu_custom_call.1}
  #allocation0 [shape = 'u32[]', space=smem, size = 0x4, offset = 0x4, fixed_abs, tag = 'smem constant byte address 0x4 - core index']
  #allocation1 [shape = 'u32[144,128]{1,0:T(1,128)}', space=vmem, size = 0x12000, scoped, tag = 'internal scratch']
  #allocation2 [shape = 'f32[1,128]{1,0:T(1,128)}', space=vmem, size = 0x200, scoped, tag = 'scratch operand']
  #allocation3 [shape = 'f32[1,128]{1,0:T(1,128)}', space=vmem, size = 0x200, scoped, tag = 'scratch operand']
  #allocation4 [shape = 'f32[1,128]{1,0:T(1,128)}', space=vmem, size = 0x200, scoped, tag = 'scratch operand']
  #allocation5 [shape = 'f32[1,128]{1,0:T(1,128)}', space=vmem, size = 0x200, scoped, tag = 'scratch operand']
  %s0 = inlined_call_operand.hbm [shape: bf16[384,128], index: 0, kind: input, shape index: {}]
  %s1 = inlined_call_operand.hbm [shape: bf16[128,128], index: 1, kind: input, shape index: {}]
  %s2 = inlined_call_operand.vmem [shape: f32[1,128], index: 2, kind: input, shape index: {}]
  %s3 = inlined_call_operand.vmem [shape: f32[1,128], index: 3, kind: input, shape index: {}]
  %s4 = inlined_call_operand.hbm [shape: bf16[128,128], index: 4, kind: input, shape index: {}]
  %s5 = inlined_call_operand.vmem [shape: f32[1,128], index: 5, kind: input, shape index: {}]
  %s6 = inlined_call_operand.hbm [shape: bf16[128,128], index: 6, kind: input, shape index: {}]
  %s7 = inlined_call_operand.vmem [shape: f32[1,128], index: 7, kind: input, shape index: {}]
  %s8 = inlined_call_operand.hbm [shape: f32[384,128], index: 8, kind: output, shape index: {}]
  %s9 = sld [smem:[#allocation0]]
  $region97: #{tpu_custom_call.1} parent=0
    _
  %s11 = ssub.s32 1, %s9
  %s12 = scalar_select 0, %s11, %s9
  $region1: #{tpu_custom_call.1} parent=0
    #allocation6 [shape = 'u8[65536]{0}', space=vmem, size = 0x10000, scoped, tag = 'input window, operand 0']
    #allocation7 [shape = 's32[2]{0}', space=sflag, size = 0x8, scoped, tag = 'scoped memory for tpu_custom_call.1']
    #allocation8 [shape = 's32[2]{0}', space=sflag, size = 0x8, scoped, tag = 'scoped memory for tpu_custom_call.1']
    #allocation9 [shape = 'u8[32768]{0}', space=vmem, size = 0x8000, scoped, tag = 'input window, operand 1, single buffered']
    #allocation10 [shape = 's32[1]{0}', space=sflag, size = 0x4, scoped, tag = 'scoped memory for tpu_custom_call.1']
    #allocation11 [shape = 'u8[32768]{0}', space=vmem, size = 0x8000, scoped, tag = 'input window, operand 4, single buffered']
    #allocation12 [shape = 'u8[32768]{0}', space=vmem, size = 0x8000, scoped, tag = 'input window, operand 6, single buffered']
    #allocation13 [shape = 's32[1]{0}', space=sflag, size = 0x4, scoped, tag = 'scoped memory for tpu_custom_call.1']
    #allocation14 [shape = 'u8[131072]{0}', space=vmem, size = 0x20000, scoped, tag = 'output window, operand 0']
    %13 = vsyncpa [#allocation7], 0
    %s14 = scalar_lea.sflag [#allocation7], 1
    %15 = vsyncpa %s14, 0
    %16 = vsyncpa [#allocation10], 0
    %17 = vsyncpa [#allocation13], 0
    %18 = vsyncpa [#allocation8], 0
    %s19 = scalar_lea.sflag [#allocation8], 1
    %20 = vsyncpa %s19, 0
    loop: start=0, step=1, limit=8
    $region2: #{tpu_custom_call.1} parent=1 // loop_pre_header
      _
    $region3: #{tpu_custom_call.1} parent=1 // loop_header
      %s22 = sphi 0, %s26
      %p23 = scmp.ge.s32.totalorder %s22, 8
      %s29 = sphi 0, %s41
      %s30 = sphi 0, %s37
      %s31 = sphi 0, %s29
      %s32 = sphi 0, %s30
      %s33 = sphi 0, %s31
      %s34 = sphi 0, %s32
      %s44 = sphi 0, %s46
      %s47 = sphi 0, %s44
      %s48 = sphi 0, %s47
      %s64 = sphi 0, %s48
      %s68 = sphi 0, %s68
      %s70 = sphi 0, %s68
      %s71 = sphi 0, %s70
      %s85 = sphi 0, %s71
      %s89 = sphi 0, %s89
      %s91 = sphi 0, %s89
      %s92 = sphi 0, %s91
      %s106 = sphi 0, %s92
      %s110 = sphi 0, %s110
      %s112 = sphi 0, %s110
      %s113 = sphi 0, %s112
      %s127 = sphi 0, %s113
      %s131 = sphi 0, %s131
      %s133 = sphi 0, %s131
      %s134 = sphi 0, %s133
      %s148 = sphi 0, %s134
      %s152 = sphi 0, %s152
      %s154 = sphi 0, %s152
      %s155 = sphi 0, %s154
      %s169 = sphi 0, %s155
      %s173 = sphi 0, %s173
      %s175 = sphi 0, %s173
      %s176 = sphi 0, %s175
      %s190 = sphi 0, %s176
      %s194 = sphi 0, %s194
      %s196 = sphi 0, %s194
      %s197 = sphi 0, %s196
      %s211 = sphi 0, %s197
      %s219 = sphi 0, %s221
      %s222 = sphi 0, %s219
      %s223 = sphi 0, %s222
      %s239 = sphi 0, %s223
    $region4: #{tpu_custom_call.1} parent=1 // loop_header_branch
      %25 = sbr.rel (%p23) target = $region8
    $region5: #{tpu_custom_call.1} parent=1 // loop_body
      %s27 = ssub.s32 %s22, 1
      %s28 = ssub.s32 %s22, 2
      %s35 = sadd.s32 1, %s30
      %p36 = scmp.ge.s32.totalorder %s35, 3
      %s37 = scalar_select %p36, 0, %s35
      %s38 = sadd.s32 1, %s29
      %s39 = scalar_select %p36, %s38, %s29
      %p40 = scmp.ge.s32.totalorder %s39, 2
      %s41 = scalar_select %p40, 0, %s39
      %s42 = ssub.s32 %s30, %s37
      %p43 = scmp.eq.s32.totalorder %s42, 0
      %s45 = sadd.s32 %s44, 1
      %s46 = scalar_select %p43, %s44, %s45
      %p49 = pneg %p43
      %p50 = scmp.eq.s32.totalorder %s22, 5
      %p51 = por %p49, %p50
      %p52 = scmp.ne.s32.totalorder %s44, %s47
      %p53 = scmp.eq.s32.totalorder %s22, 0
      %p54 = por %p52, %p53
      %p55 = scmp.ne.s32.totalorder %s44, %s47
      %p56 = scmp.eq.s32.totalorder %s27, 5
      %p57 = por %p55, %p56
      %p58 = scmp.ne.s32.totalorder %s47, %s48
      %p59 = scmp.eq.s32.totalorder %s27, 0
      %p60 = por %p58, %p59
      %p61 = scmp.ne.s32.totalorder %s47, %s48
      %p62 = scmp.eq.s32.totalorder %s28, 5
      %p63 = por %p61, %p62
      %p65 = scmp.ne.s32.totalorder %s48, %s64
      %p66 = scmp.eq.s32.totalorder %s28, 0
      %p67 = por %p65, %p66
      %s69 = sadd.s32 %s68, 1
      %p72 = scmp.eq.s32.totalorder %s22, 5
      %p73 = scmp.ne.s32.totalorder %s68, %s70
      %p74 = scmp.eq.s32.totalorder %s22, 0
      %p75 = por %p73, %p74
      %p76 = scmp.ne.s32.totalorder %s68, %s70
      %p77 = scmp.eq.s32.totalorder %s27, 5
      %p78 = por %p76, %p77
      %p79 = scmp.ne.s32.totalorder %s70, %s71
      %p80 = scmp.eq.s32.totalorder %s27, 0
      %p81 = por %p79, %p80
      %p82 = scmp.ne.s32.totalorder %s70, %s71
      %p83 = scmp.eq.s32.totalorder %s28, 5
      %p84 = por %p82, %p83
      %p86 = scmp.ne.s32.totalorder %s71, %s85
      %p87 = scmp.eq.s32.totalorder %s28, 0
      %p88 = por %p86, %p87
      %s90 = sadd.s32 %s89, 1
      %p93 = scmp.eq.s32.totalorder %s22, 5
      %p94 = scmp.ne.s32.totalorder %s89, %s91
      %p95 = scmp.eq.s32.totalorder %s22, 0
      %p96 = por %p94, %p95
      %p97 = scmp.ne.s32.totalorder %s89, %s91
      %p98 = scmp.eq.s32.totalorder %s27, 5
      %p99 = por %p97, %p98
      %p100 = scmp.ne.s32.totalorder %s91, %s92
      %p101 = scmp.eq.s32.totalorder %s27, 0
      %p102 = por %p100, %p101
      %p103 = scmp.ne.s32.totalorder %s91, %s92
      %p104 = scmp.eq.s32.totalorder %s28, 5
      %p105 = por %p103, %p104
      %p107 = scmp.ne.s32.totalorder %s92, %s106
      %p108 = scmp.eq.s32.totalorder %s28, 0
      %p109 = por %p107, %p108
      %s111 = sadd.s32 %s110, 1
      %p114 = scmp.eq.s32.totalorder %s22, 5
      %p115 = scmp.ne.s32.totalorder %s110, %s112
      %p116 = scmp.eq.s32.totalorder %s22, 0
      %p117 = por %p115, %p116
      %p118 = scmp.ne.s32.totalorder %s110, %s112
      %p119 = scmp.eq.s32.totalorder %s27, 5
      %p120 = por %p118, %p119
      %p121 = scmp.ne.s32.totalorder %s112, %s113
      %p122 = scmp.eq.s32.totalorder %s27, 0
      %p123 = por %p121, %p122
      %p124 = scmp.ne.s32.totalorder %s112, %s113
      %p125 = scmp.eq.s32.totalorder %s28, 5
      %p126 = por %p124, %p125
      %p128 = scmp.ne.s32.totalorder %s113, %s127
      %p129 = scmp.eq.s32.totalorder %s28, 0
      %p130 = por %p128, %p129
      %s132 = sadd.s32 %s131, 1
      %p135 = scmp.eq.s32.totalorder %s22, 5
      %p136 = scmp.ne.s32.totalorder %s131, %s133
      %p137 = scmp.eq.s32.totalorder %s22, 0
      %p138 = por %p136, %p137
      %p139 = scmp.ne.s32.totalorder %s131, %s133
      %p140 = scmp.eq.s32.totalorder %s27, 5
      %p141 = por %p139, %p140
      %p142 = scmp.ne.s32.totalorder %s133, %s134
      %p143 = scmp.eq.s32.totalorder %s27, 0
      %p144 = por %p142, %p143
      %p145 = scmp.ne.s32.totalorder %s133, %s134
      %p146 = scmp.eq.s32.totalorder %s28, 5
      %p147 = por %p145, %p146
      %p149 = scmp.ne.s32.totalorder %s134, %s148
      %p150 = scmp.eq.s32.totalorder %s28, 0
      %p151 = por %p149, %p150
      %s153 = sadd.s32 %s152, 1
      %p156 = scmp.eq.s32.totalorder %s22, 5
      %p157 = scmp.ne.s32.totalorder %s152, %s154
      %p158 = scmp.eq.s32.totalorder %s22, 0
      %p159 = por %p157, %p158
      %p160 = scmp.ne.s32.totalorder %s152, %s154
      %p161 = scmp.eq.s32.totalorder %s27, 5
      %p162 = por %p160, %p161
      %p163 = scmp.ne.s32.totalorder %s154, %s155
      %p164 = scmp.eq.s32.totalorder %s27, 0
      %p165 = por %p163, %p164
      %p166 = scmp.ne.s32.totalorder %s154, %s155
      %p167 = scmp.eq.s32.totalorder %s28, 5
      %p168 = por %p166, %p167
      %p170 = scmp.ne.s32.totalorder %s155, %s169
      %p171 = scmp.eq.s32.totalorder %s28, 0
      %p172 = por %p170, %p171
      %s174 = sadd.s32 %s173, 1
      %p177 = scmp.eq.s32.totalorder %s22, 5
      %p178 = scmp.ne.s32.totalorder %s173, %s175
      %p179 = scmp.eq.s32.totalorder %s22, 0
      %p180 = por %p178, %p179
      %p181 = scmp.ne.s32.totalorder %s173, %s175
      %p182 = scmp.eq.s32.totalorder %s27, 5
      %p183 = por %p181, %p182
      %p184 = scmp.ne.s32.totalorder %s175, %s176
      %p185 = scmp.eq.s32.totalorder %s27, 0
      %p186 = por %p184, %p185
      %p187 = scmp.ne.s32.totalorder %s175, %s176
      %p188 = scmp.eq.s32.totalorder %s28, 5
      %p189 = por %p187, %p188
      %p191 = scmp.ne.s32.totalorder %s176, %s190
      %p192 = scmp.eq.s32.totalorder %s28, 0
      %p193 = por %p191, %p192
      %s195 = sadd.s32 %s194, 1
      %p198 = scmp.eq.s32.totalorder %s22, 5
      %p199 = scmp.ne.s32.totalorder %s194, %s196
      %p200 = scmp.eq.s32.totalorder %s22, 0
      %p201 = por %p199, %p200
      %p202 = scmp.ne.s32.totalorder %s194, %s196
      %p203 = scmp.eq.s32.totalorder %s27, 5
      %p204 = por %p202, %p203
      %p205 = scmp.ne.s32.totalorder %s196, %s197
      %p206 = scmp.eq.s32.totalorder %s27, 0
      %p207 = por %p205, %p206
      %p208 = scmp.ne.s32.totalorder %s196, %s197
      %p209 = scmp.eq.s32.totalorder %s28, 5
      %p210 = por %p208, %p209
      %p212 = scmp.ne.s32.totalorder %s197, %s211
      %p213 = scmp.eq.s32.totalorder %s28, 0
      %p214 = por %p212, %p213
      %s215 = smul.u32 %s29, %s30
      %s216 = smul.u32 %s41, %s37
      %s217 = ssub.s32 %s215, %s216
      %p218 = scmp.eq.s32.totalorder %s217, 0
      %s220 = sadd.s32 %s219, 1
      %s221 = scalar_select %p218, %s219, %s220
      %p224 = pneg %p218
      %p225 = scmp.eq.s32.totalorder %s22, 5
      %p226 = por %p224, %p225
      %p227 = scmp.ne.s32.totalorder %s219, %s222
      %p228 = scmp.eq.s32.totalorder %s22, 0
      %p229 = por %p227, %p228
      %p230 = scmp.ne.s32.totalorder %s219, %s222
      %p231 = scmp.eq.s32.totalorder %s27, 5
      %p232 = por %p230, %p231
      %p233 = scmp.ne.s32.totalorder %s222, %s223
      %p234 = scmp.eq.s32.totalorder %s27, 0
      %p235 = por %p233, %p234
      %p236 = scmp.ne.s32.totalorder %s222, %s223
      %p237 = scmp.eq.s32.totalorder %s28, 5
      %p238 = por %p236, %p237
      %p240 = scmp.ne.s32.totalorder %s223, %s239
      %p241 = scmp.eq.s32.totalorder %s28, 0
      %p242 = por %p240, %p241
      %p243 = scmp.le.s32.totalorder 1, %s22
      %p244 = scmp.lt.s32.totalorder %s22, 7
      %p245 = pnand %p243, %p244
      %p246 = pneg %p245
      // Predicated region
      $region9: #{tpu_custom_call.1} parent=5 // pred_check
        _
      $region10: #{tpu_custom_call.1} parent=5 // pred_check_branch
        %248 = sbr.rel (%p245) target = $region12
      $region11: #{tpu_custom_call.1} parent=5 // pred_region
        %s249 = ssub.s32 %s22, 1
        // Predicated region
        $region13: #{tpu_custom_call.1} parent=11 // pred_check
          %p250 = pneg %p81
        $region14: #{tpu_custom_call.1} parent=11 // pred_check_branch
          %252 = sbr.rel (%p250) target = $region16
        $region15: #{tpu_custom_call.1} parent=11 // pred_region
          %s254 = ssub.s32 1024, 1024
          %255 = vsyncadd [#allocation10], %s254
          %s256 = sshll.u32 [#allocation9], 4
          %s257 = int_to_ptr.vmem [resolvable:$true] %s256
          %262 = dma.hbm_to_vmem [thread:$0]  %s1, 1024, %s257, [#allocation10], 64, 64, 4
        $region16: #{tpu_custom_call.1} parent=11 // pred_fallthru
          _
        // Predicated region
        $region17: #{tpu_custom_call.1} parent=11 // pred_check
          %p263 = pneg %p102
        $region18: #{tpu_custom_call.1} parent=11 // pred_check_branch
          %265 = sbr.rel (%p263) target = $region20
        $region19: #{tpu_custom_call.1} parent=11 // pred_region
          _
        $region20: #{tpu_custom_call.1} parent=11 // pred_fallthru
          _
        // Predicated region
        $region21: #{tpu_custom_call.1} parent=11 // pred_check
          %p266 = pneg %p123
        $region22: #{tpu_custom_call.1} parent=11 // pred_check_branch
          %268 = sbr.rel (%p266) target = $region24
        $region23: #{tpu_custom_call.1} parent=11 // pred_region
          _
        $region24: #{tpu_custom_call.1} parent=11 // pred_fallthru
          _
        // Predicated region
        $region25: #{tpu_custom_call.1} parent=11 // pred_check
          %p269 = pneg %p144
        $region26: #{tpu_custom_call.1} parent=11 // pred_check_branch
          %271 = sbr.rel (%p269) target = $region28
        $region27: #{tpu_custom_call.1} parent=11 // pred_region
          %s273 = ssub.s32 1024, 1024
          %274 = vsyncadd [#allocation10], %s273
          %s275 = sshll.u32 [#allocation11], 4
          %s276 = int_to_ptr.vmem [resolvable:$true] %s275
          %281 = dma.hbm_to_vmem [thread:$0]  %s4, 1024, %s276, [#allocation10], 64, 64, 4
        $region28: #{tpu_custom_call.1} parent=11 // pred_fallthru
          _
        // Predicated region
        $region29: #{tpu_custom_call.1} parent=11 // pred_check
          %p282 = pneg %p165
        $region30: #{tpu_custom_call.1} parent=11 // pred_check_branch
          %284 = sbr.rel (%p282) target = $region32
        $region31: #{tpu_custom_call.1} parent=11 // pred_region
          _
        $region32: #{tpu_custom_call.1} parent=11 // pred_fallthru
          _
        // Predicated region
        $region33: #{tpu_custom_call.1} parent=11 // pred_check
          %p285 = pneg %p186
        $region34: #{tpu_custom_call.1} parent=11 // pred_check_branch
          %287 = sbr.rel (%p285) target = $region36
        $region35: #{tpu_custom_call.1} parent=11 // pred_region
          %s289 = ssub.s32 1024, 1024
          %290 = vsyncadd [#allocation13], %s289
          %s291 = sshll.u32 [#allocation12], 4
          %s292 = int_to_ptr.vmem [resolvable:$true] %s291
          %297 = dma.hbm_to_vmem [thread:$0]  %s6, 1024, %s292, [#allocation13], 64, 64, 4
        $region36: #{tpu_custom_call.1} parent=11 // pred_fallthru
          _
        // Predicated region
        $region37: #{tpu_custom_call.1} parent=11 // pred_check
          %p298 = pneg %p207
        $region38: #{tpu_custom_call.1} parent=11 // pred_check_branch
          %300 = sbr.rel (%p298) target = $region40
        $region39: #{tpu_custom_call.1} parent=11 // pred_region
          _
        $region40: #{tpu_custom_call.1} parent=11 // pred_fallthru
          _
      $region12: #{tpu_custom_call.1} parent=5 // pred_fallthru
        _
      %p301 = scmp.lt.s32.totalorder %s22, 6
      // Predicated region
      $region41: #{tpu_custom_call.1} parent=5 // pred_check
        %p302 = pneg %p301
      $region42: #{tpu_custom_call.1} parent=5 // pred_check_branch
        %304 = sbr.rel (%p302) target = $region44
      $region43: #{tpu_custom_call.1} parent=5 // pred_region
        // Predicated region
        $region45: #{tpu_custom_call.1} parent=43 // pred_check
          %p305 = pneg %p54
        $region46: #{tpu_custom_call.1} parent=43 // pred_check_branch
          %307 = sbr.rel (%p305) target = $region48
        $region47: #{tpu_custom_call.1} parent=43 // pred_region
          %s308 = sand.u32 %s44, 1
          %s309 = scalar_lea.sflag [#allocation7], %s308
          %s310 = sand.u32 %s44, 1
          %s311 = smul.addr %s310, 64
          %s312 = scalar_lea.vmem [#allocation6], %s311
          %s313 = smul.u32 16, %s30
          %s315 = ssub.s32 1024, 1024
          %316 = vsyncadd %s309, %s315
          %s317 = smul.addr %s313, 64
          %s318 = scalar_lea.hbm %s0, %s317
          %s319 = sshll.u32 %s312, 4
          %s320 = int_to_ptr.vmem [resolvable:$true] %s319
          %325 = dma.hbm_to_vmem [thread:$0]  %s318, 1024, %s320, %s309, 64, 64, 4
        $region48: #{tpu_custom_call.1} parent=43 // pred_fallthru
          _
      $region44: #{tpu_custom_call.1} parent=5 // pred_fallthru
        _
      %p326 = scmp.le.s32.totalorder 1, %s22
      %p327 = scmp.lt.s32.totalorder %s22, 7
      %p328 = pnand %p326, %p327
      %p329 = pneg %p328
      // Predicated region
      $region49: #{tpu_custom_call.1} parent=5 // pred_check
        _
      $region50: #{tpu_custom_call.1} parent=5 // pred_check_branch
        %331 = sbr.rel (%p328) target = $region52
      $region51: #{tpu_custom_call.1} parent=5 // pred_region
        %s332 = ssub.s32 %s22, 1
        %s333 = sand.u32 %s47, 1
        %s334 = scalar_lea.sflag [#allocation7], %s333
        %s335 = sand.u32 %s47, 1
        %s336 = smul.addr %s335, 64
        %s337 = scalar_lea.vmem [#allocation6], %s336
        // Predicated region
        $region53: #{tpu_custom_call.1} parent=51 // pred_check
          %p338 = pneg %p60
        $region54: #{tpu_custom_call.1} parent=51 // pred_check_branch
          %340 = sbr.rel (%p338) target = $region56
        $region55: #{tpu_custom_call.1} parent=51 // pred_region
          %341 = dma.done %s334, 1024
        $region56: #{tpu_custom_call.1} parent=51 // pred_fallthru
          _
        // Predicated region
        $region57: #{tpu_custom_call.1} parent=51 // pred_check
          %p342 = pneg %p81
        $region58: #{tpu_custom_call.1} parent=51 // pred_check_branch
          %344 = sbr.rel (%p342) target = $region60
        $region59: #{tpu_custom_call.1} parent=51 // pred_region
          %345 = dma.done [#allocation10], 1024
        $region60: #{tpu_custom_call.1} parent=51 // pred_fallthru
          _
        // Predicated region
        $region61: #{tpu_custom_call.1} parent=51 // pred_check
          %p346 = pneg %p144
        $region62: #{tpu_custom_call.1} parent=51 // pred_check_branch
          %348 = sbr.rel (%p346) target = $region64
        $region63: #{tpu_custom_call.1} parent=51 // pred_region
          %349 = dma.done [#allocation10], 1024
        $region64: #{tpu_custom_call.1} parent=51 // pred_fallthru
          _
        // Predicated region
        $region65: #{tpu_custom_call.1} parent=51 // pred_check
          %p350 = pneg %p186
        $region66: #{tpu_custom_call.1} parent=51 // pred_check_branch
          %352 = sbr.rel (%p350) target = $region68
        $region67: #{tpu_custom_call.1} parent=51 // pred_region
          %353 = dma.done [#allocation13], 1024
        $region68: #{tpu_custom_call.1} parent=51 // pred_fallthru
          _
        %s354 = sand.u32 %s47, 1
        %s355 = scalar_lea.sflag [#allocation7], %s354
        %s356 = sand.u32 %s47, 1
        %s357 = smul.addr %s356, 64
        %s358 = scalar_lea.vmem [#allocation6], %s357
        %p359 = pneg %p60
        %p360 = pneg %p57
        %p361 = pneg %p81
        %p362 = pneg %p78
        %p363 = pneg %p102
        %p364 = pneg %p99
        %p365 = pneg %p123
        %p366 = pneg %p120
        %p367 = pneg %p144
        %p368 = pneg %p141
        %p369 = pneg %p165
        %p370 = pneg %p162
        %p371 = pneg %p186
        %p372 = pneg %p183
        %p373 = pneg %p207
        %p374 = pneg %p204
        %p375 = pneg %p235
        %p376 = pneg %p232
        %s377 = sand.u32 %s222, 1
        %s378 = scalar_lea.sflag [#allocation8], %s377
        %s379 = sand.u32 %s222, 1
        %s380 = smul.addr %s379, 128
        %s381 = scalar_lea.vmem [#allocation14], %s380
        %s382 = smul.u32 16, %s32
        %s383 = smul.u32 %s31, %s32
        %s384 = smul.u32 16, %s383
        %p386 = scmp.eq.s32.totalorder %s31, 0
        %p387 = scmp.eq.s32.totalorder %s32, 0
        %p388 = pnand %p386, %p387
        %p389 = pneg %p388
        // Predicated region
        $region69: #{tpu_custom_call.1} parent=51 // pred_check
          _
        $region70: #{tpu_custom_call.1} parent=51 // pred_check_branch
          %391 = sbr.rel (%p388) target = $region72
        $region71: #{tpu_custom_call.1} parent=51 // pred_region
          %392 = vst [vmem:[#allocation2] sm:$0x1] 0.0
          %393 = vst [vmem:[#allocation3] sm:$0x1] 0.0
        $region72: #{tpu_custom_call.1} parent=51 // pred_fallthru
          _
        // Predicated region
        $region73: #{tpu_custom_call.1} parent=51 // pred_check
          %p394 = pneg %p386
        $region74: #{tpu_custom_call.1} parent=51 // pred_check_branch
          %396 = sbr.rel (%p394) target = $region76
        $region75: #{tpu_custom_call.1} parent=51 // pred_region
          %v397 = vld [vmem:[%s337] sm:$0xf]
          %v398 = vld [vmem:[%s337 + $0x4] sm:$0xf]
          %v399 = vld [vmem:[%s337 + $0x8] sm:$0xf]
          %v400 = vld [vmem:[%s337 + $0xc] sm:$0xf]
          %v401 = vld [vmem:[%s337 + $0x10] sm:$0xf]
          %v402 = vld [vmem:[%s337 + $0x14] sm:$0xf]
          %v403 = vld [vmem:[%s337 + $0x18] sm:$0xf]
          %v404 = vld [vmem:[%s337 + $0x1c] sm:$0xf]
          %v405 = vld [vmem:[%s337 + $0x20] sm:$0xf]
          %v406 = vld [vmem:[%s337 + $0x24] sm:$0xf]
          %v407 = vld [vmem:[%s337 + $0x28] sm:$0xf]
          %v408 = vld [vmem:[%s337 + $0x2c] sm:$0xf]
          %v409 = vld [vmem:[%s337 + $0x30] sm:$0xf]
          %v410 = vld [vmem:[%s337 + $0x34] sm:$0xf]
          %v411 = vld [vmem:[%s337 + $0x38] sm:$0xf]
          %v412 = vld [vmem:[%s337 + $0x3c] sm:$0xf]
          %v413 = vld [vmem:[#allocation9] sm:$0xf]
          %v414 = vld [vmem:[#allocation9 + $0x4] sm:$0xf]
          %v415 = vld [vmem:[#allocation9 + $0x8] sm:$0xf]
          %v416 = vld [vmem:[#allocation9 + $0xc] sm:$0xf]
          %v417 = vld [vmem:[#allocation9 + $0x10] sm:$0xf]
          %v418 = vld [vmem:[#allocation9 + $0x14] sm:$0xf]
          %v419 = vld [vmem:[#allocation9 + $0x18] sm:$0xf]
          %v420 = vld [vmem:[#allocation9 + $0x1c] sm:$0xf]
          %v421 = vld [vmem:[#allocation9 + $0x20] sm:$0xf]
          %v422 = vld [vmem:[#allocation9 + $0x24] sm:$0xf]
          %v423 = vld [vmem:[#allocation9 + $0x28] sm:$0xf]
          %v424 = vld [vmem:[#allocation9 + $0x2c] sm:$0xf]
          %v425 = vld [vmem:[#allocation9 + $0x30] sm:$0xf]
          %v426 = vld [vmem:[#allocation9 + $0x34] sm:$0xf]
          %v427 = vld [vmem:[#allocation9 + $0x38] sm:$0xf]
          %v428 = vld [vmem:[#allocation9 + $0x3c] sm:$0xf]
          %v445 = vunpack.c.l.b16 %v397
          %v446 = vunpack.c.l.b16 %v398
          %v447 = vunpack.c.l.b16 %v399
          %v448 = vunpack.c.l.b16 %v400
          %v449 = vunpack.c.l.b16 %v401
          %v450 = vunpack.c.l.b16 %v402
          %v451 = vunpack.c.l.b16 %v403
          %v452 = vunpack.c.l.b16 %v404
          %v453 = vunpack.c.l.b16 %v405
          %v454 = vunpack.c.l.b16 %v406
          %v455 = vunpack.c.l.b16 %v407
          %v456 = vunpack.c.l.b16 %v408
          %v457 = vunpack.c.l.b16 %v409
          %v458 = vunpack.c.l.b16 %v410
          %v459 = vunpack.c.l.b16 %v411
          %v460 = vunpack.c.l.b16 %v412
          %v461 = vpack.c.b16 %v446, %v445
          %v462 = vpack.c.b16 %v448, %v447
          %v463 = vpack.c.b16 %v450, %v449
          %v464 = vpack.c.b16 %v452, %v451
          %v465 = vpack.c.b16 %v454, %v453
          %v466 = vpack.c.b16 %v456, %v455
          %v467 = vpack.c.b16 %v458, %v457
          %v468 = vpack.c.b16 %v460, %v459
          %v493 = vunpack.c.l.b16 %v413
          %v494 = vunpack.c.l.b16 %v414
          %v495 = vunpack.c.l.b16 %v415
          %v496 = vunpack.c.l.b16 %v416
          %v497 = vunpack.c.l.b16 %v417
          %v498 = vunpack.c.l.b16 %v418
          %v499 = vunpack.c.l.b16 %v419
          %v500 = vunpack.c.l.b16 %v420
          %v501 = vunpack.c.l.b16 %v421
          %v502 = vunpack.c.l.b16 %v422
          %v503 = vunpack.c.l.b16 %v423
          %v504 = vunpack.c.l.b16 %v424
          %v505 = vunpack.c.l.b16 %v425
          %v506 = vunpack.c.l.b16 %v426
          %v507 = vunpack.c.l.b16 %v427
          %v508 = vunpack.c.l.b16 %v428
          %v509 = vpack.c.b16 %v494, %v493
          %v510 = vpack.c.b16 %v496, %v495
          %v511 = vpack.c.b16 %v498, %v497
          %v512 = vpack.c.b16 %v500, %v499
          %v513 = vpack.c.b16 %v502, %v501
          %v514 = vpack.c.b16 %v504, %v503
          %v515 = vpack.c.b16 %v506, %v505
          %v516 = vpack.c.b16 %v508, %v507
          %525 = vmatprep.subr.bf16.mxu0 0
          %526 = vmatpush1.bf16.msra.mxu0 %v509
          %527 = vmatprep.subr.bf16.mxu0 0
          %528 = vmatpush1.bf16.msra.mxu0 %v510
          %529 = vmatprep.subr.bf16.mxu0 0
          %530 = vmatpush1.bf16.msra.mxu0 %v511
          %531 = vmatprep.subr.bf16.mxu0 0
          %532 = vmatpush1.bf16.msra.mxu0 %v512
          %533 = vmatprep.subr.bf16.mxu0 0
          %534 = vmatpush1.bf16.msra.mxu0 %v513
          %535 = vmatprep.subr.bf16.mxu0 0
          %536 = vmatpush1.bf16.msra.mxu0 %v514
          %537 = vmatprep.subr.bf16.mxu0 0
          %538 = vmatpush1.bf16.msra.mxu0 %v515
          %539 = vmatprep.subr.bf16.mxu0 0
          %540 = vmatpush1.bf16.msra.mxu0 %v516
          %541 = vmatprep.subr.bf16.mxu0 0
          %542 = vmatpush1.bf16.msra.mxu0 0
          %543 = vmatprep.subr.bf16.mxu0 0
          %544 = vmatpush1.bf16.msra.mxu0 0
          %545 = vmatprep.subr.bf16.mxu0 0
          %546 = vmatpush1.bf16.msra.mxu0 0
          %547 = vmatprep.subr.bf16.mxu0 0
          %548 = vmatpush1.bf16.msra.mxu0 0
          %549 = vmatprep.subr.bf16.mxu0 0
          %550 = vmatpush1.bf16.msra.mxu0 0
          %551 = vmatprep.subr.bf16.mxu0 0
          %552 = vmatpush1.bf16.msra.mxu0 0
          %553 = vmatprep.subr.bf16.mxu0 0
          %554 = vmatpush1.bf16.msra.mxu0 0
          %555 = vmatprep.subr.bf16.mxu0 0
          %556 = vmatpush1.bf16.msra.mxu0 0
          %557 = vmatprep.mubr.bf16.mxu0 0
          %558 = vmatmul.mubr.bf16.gmra.mrb[0].mxu0 %v461
          %v559 = vpop.f32.mrb[0].mxu0
          %v560 = vadd.f32 0.0, %v559
          %v561 = vpop.f32.mrb[0].mxu0
          %v562 = vpop.f32.mrb[0].mxu0
          %v563 = vadd.f32 0.0, %v562
          %v564 = vpop.f32.mrb[0].mxu0
          %565 = vmatprep.mubr.bf16.mxu0 0
          %566 = vmatmul.mubr.bf16.gmra.mrb[0].mxu0 %v462
          %v567 = vpop.f32.mrb[0].mxu0
          %v568 = vadd.f32 0.0, %v567
          %v569 = vpop.f32.mrb[0].mxu0
          %v570 = vpop.f32.mrb[0].mxu0
          %v571 = vadd.f32 0.0, %v570
          %v572 = vpop.f32.mrb[0].mxu0
          %573 = vmatprep.mubr.bf16.mxu0 0
          %574 = vmatmul.mubr.bf16.gmra.mrb[0].mxu0 %v463
          %v575 = vpop.f32.mrb[0].mxu0
          %v576 = vadd.f32 0.0, %v575
          %v577 = vpop.f32.mrb[0].mxu0
          %v578 = vpop.f32.mrb[0].mxu0
          %v579 = vadd.f32 0.0, %v578
          %v580 = vpop.f32.mrb[0].mxu0
          %581 = vmatprep.mubr.bf16.mxu0 0
          %582 = vmatmul.mubr.bf16.gmra.mrb[0].mxu0 %v464
          %v583 = vpop.f32.mrb[0].mxu0
          %v584 = vadd.f32 0.0, %v583
          %v585 = vpop.f32.mrb[0].mxu0
          %v586 = vpop.f32.mrb[0].mxu0
          %v587 = vadd.f32 0.0, %v586
          %v588 = vpop.f32.mrb[0].mxu0
          %589 = vmatprep.mubr.bf16.mxu0 0
          %590 = vmatmul.mubr.bf16.gmra.mrb[0].mxu0 %v465
          %v591 = vpop.f32.mrb[0].mxu0
          %v592 = vadd.f32 0.0, %v591
          %v593 = vpop.f32.mrb[0].mxu0
          %v594 = vpop.f32.mrb[0].mxu0
          %v595 = vadd.f32 0.0, %v594
          %v596 = vpop.f32.mrb[0].mxu0
          %597 = vmatprep.mubr.bf16.mxu0 0
          %598 = vmatmul.mubr.bf16.gmra.mrb[0].mxu0 %v466
          %v599 = vpop.f32.mrb[0].mxu0
          %v600 = vadd.f32 0.0, %v599
          %v601 = vpop.f32.mrb[0].mxu0
          %v602 = vpop.f32.mrb[0].mxu0
          %v603 = vadd.f32 0.0, %v602
          %v604 = vpop.f32.mrb[0].mxu0
          %605 = vmatprep.mubr.bf16.mxu0 0
          %606 = vmatmul.mubr.bf16.gmra.mrb[0].mxu0 %v467
          %v607 = vpop.f32.mrb[0].mxu0
          %v608 = vadd.f32 0.0, %v607
          %v609 = vpop.f32.mrb[0].mxu0
          %v610 = vpop.f32.mrb[0].mxu0
          %v611 = vadd.f32 0.0, %v610
          %v612 = vpop.f32.mrb[0].mxu0
          %613 = vmatprep.mubr.bf16.mxu0 0
          %614 = vmatmul.mubr.bf16.gmra.mrb[0].mxu0 %v468
          %v615 = vpop.f32.mrb[0].mxu0
          %v616 = vadd.f32 0.0, %v615
          %v617 = vpop.f32.mrb[0].mxu0
          %v618 = vpop.f32.mrb[0].mxu0
          %v619 = vadd.f32 0.0, %v618
          %v620 = vpop.f32.mrb[0].mxu0
          %621 = vdwg.mxu0
          %v622 = vld [vmem:[#allocation2] sm:$0x1]
          %v623 = vadd.f32 %v560, %v563
          %v624 = vadd.f32 %v623, %v568
          %v625 = vadd.f32 %v624, %v571
          %v626 = vadd.f32 %v625, %v576
          %v627 = vadd.f32 %v626, %v579
          %v628 = vadd.f32 %v627, %v584
          %v629 = vadd.f32 %v628, %v587
          %v630 = vadd.f32 %v629, %v592
          %v631 = vadd.f32 %v630, %v595
          %v632 = vadd.f32 %v631, %v600
          %v633 = vadd.f32 %v632, %v603
          %v634 = vadd.f32 %v633, %v608
          %v635 = vadd.f32 %v634, %v611
          %v636 = vadd.f32 %v635, %v616
          %v637 = vadd.f32 %v636, %v619
          %v638 = vrot.slane %v637, 4
          %v639 = vadd.f32 %v637, %v638
          %v640 = vrot.slane %v639, 2
          %v641 = vadd.f32 %v639, %v640
          %v642 = vrot.slane %v641, 1
          %v643 = vadd.f32 %v641, %v642
          %v644 = vadd.f32 %v622, %v643
          %645 = vst [vmem:[#allocation2] sm:$0x1] %v644
          %v646 = vld [vmem:[#allocation3] sm:$0x1]
          %v647 = vmul.f32 %v560, %v560
          %v648 = vmul.f32 %v563, %v563
          %v649 = vmul.f32 %v568, %v568
          %v650 = vmul.f32 %v571, %v571
          %v651 = vmul.f32 %v576, %v576
          %v652 = vmul.f32 %v579, %v579
          %v653 = vmul.f32 %v584, %v584
          %v654 = vmul.f32 %v587, %v587
          %v655 = vmul.f32 %v592, %v592
          %v656 = vmul.f32 %v595, %v595
          %v657 = vmul.f32 %v600, %v600
          %v658 = vmul.f32 %v603, %v603
          %v659 = vmul.f32 %v608, %v608
          %v660 = vmul.f32 %v611, %v611
          %v661 = vmul.f32 %v616, %v616
          %v662 = vmul.f32 %v619, %v619
          %v663 = vadd.f32 %v647, %v648
          %v664 = vadd.f32 %v663, %v649
          %v665 = vadd.f32 %v664, %v650
          %v666 = vadd.f32 %v665, %v651
          %v667 = vadd.f32 %v666, %v652
          %v668 = vadd.f32 %v667, %v653
          %v669 = vadd.f32 %v668, %v654
          %v670 = vadd.f32 %v669, %v655
          %v671 = vadd.f32 %v670, %v656
          %v672 = vadd.f32 %v671, %v657
          %v673 = vadd.f32 %v672, %v658
          %v674 = vadd.f32 %v673, %v659
          %v675 = vadd.f32 %v674, %v660
          %v676 = vadd.f32 %v675, %v661
          %v677 = vadd.f32 %v676, %v662
          %v678 = vrot.slane %v677, 4
          %v679 = vadd.f32 %v677, %v678
          %v680 = vrot.slane %v679, 2
          %v681 = vadd.f32 %v679, %v680
          %v682 = vrot.slane %v681, 1
          %v683 = vadd.f32 %v681, %v682
          %v684 = vadd.f32 %v646, %v683
          %685 = vst [vmem:[#allocation3] sm:$0x1] %v684
        $region76: #{tpu_custom_call.1} parent=51 // pred_fallthru
          _
        %p686 = scmp.eq.s32.totalorder %s31, 1
        %p687 = pnand %p686, %p387
        %p688 = pneg %p687
        // Predicated region
        $region77: #{tpu_custom_call.1} parent=51 // pred_check
          _
        $region78: #{tpu_custom_call.1} parent=51 // pred_check_branch
          %690 = sbr.rel (%p687) target = $region80
        $region79: #{tpu_custom_call.1} parent=51 // pred_region
          %v691 = vld [vmem:[#allocation2] sm:$0x1]
          %v692 = vmul.f32 %v691, 0.0033333334
          %v693 = vld [vmem:[#allocation3] sm:$0x1]
          %v694 = vmul.f32 %v693, 0.0033333334
          %v695 = vmul.f32 %v692, %v692
          %v696 = vsub.f32 %v694, %v695
          %v697 = vmax.f32 %v696, 0.0
          %v698 = vadd.f32 %v697, 1e-05
          %v699 = vrsqrt.pop %v698
          %v700 = vld [vmem:[%s2] sm:$0x1]
          %v701 = vmul.f32 %v699, %v700
          %702 = vst [vmem:[#allocation4] sm:$0x1] %v701
          %v703 = vld [vmem:[%s3] sm:$0x1]
          %v704 = vmul.f32 %v692, %v701
          %v705 = vsub.f32 %v703, %v704
          %706 = vst [vmem:[#allocation5] sm:$0x1] %v705
        $region80: #{tpu_custom_call.1} parent=51 // pred_fallthru
          _
        // Predicated region
        $region81: #{tpu_custom_call.1} parent=51 // pred_check
          %p707 = pneg %p686
        $region82: #{tpu_custom_call.1} parent=51 // pred_check_branch
          %709 = sbr.rel (%p707) target = $region84
        $region83: #{tpu_custom_call.1} parent=51 // pred_region
          %v710 = vld [vmem:[%s337] sm:$0xf]
          %v711 = vld [vmem:[%s337 + $0x4] sm:$0xf]
          %v712 = vld [vmem:[%s337 + $0x8] sm:$0xf]
          %v713 = vld [vmem:[%s337 + $0xc] sm:$0xf]
          %v714 = vld [vmem:[%s337 + $0x10] sm:$0xf]
          %v715 = vld [vmem:[%s337 + $0x14] sm:$0xf]
          %v716 = vld [vmem:[%s337 + $0x18] sm:$0xf]
          %v717 = vld [vmem:[%s337 + $0x1c] sm:$0xf]
          %v718 = vld [vmem:[%s337 + $0x20] sm:$0xf]
          %v719 = vld [vmem:[%s337 + $0x24] sm:$0xf]
          %v720 = vld [vmem:[%s337 + $0x28] sm:$0xf]
          %v721 = vld [vmem:[%s337 + $0x2c] sm:$0xf]
          %v722 = vld [vmem:[%s337 + $0x30] sm:$0xf]
          %v723 = vld [vmem:[%s337 + $0x34] sm:$0xf]
          %v724 = vld [vmem:[%s337 + $0x38] sm:$0xf]
          %v725 = vld [vmem:[%s337 + $0x3c] sm:$0xf]
          %v726 = vld [vmem:[#allocation9] sm:$0xf]
          %v727 = vld [vmem:[#allocation9 + $0x4] sm:$0xf]
          %v728 = vld [vmem:[#allocation9 + $0x8] sm:$0xf]
          %v729 = vld [vmem:[#allocation9 + $0xc] sm:$0xf]
          %v730 = vld [vmem:[#allocation9 + $0x10] sm:$0xf]
          %v731 = vld [vmem:[#allocation9 + $0x14] sm:$0xf]
          %v732 = vld [vmem:[#allocation9 + $0x18] sm:$0xf]
          %v733 = vld [vmem:[#allocation9 + $0x1c] sm:$0xf]
          %v734 = vld [vmem:[#allocation9 + $0x20] sm:$0xf]
          %v735 = vld [vmem:[#allocation9 + $0x24] sm:$0xf]
          %v736 = vld [vmem:[#allocation9 + $0x28] sm:$0xf]
          %v737 = vld [vmem:[#allocation9 + $0x2c] sm:$0xf]
          %v738 = vld [vmem:[#allocation9 + $0x30] sm:$0xf]
          %v739 = vld [vmem:[#allocation9 + $0x34] sm:$0xf]
          %v740 = vld [vmem:[#allocation9 + $0x38] sm:$0xf]
          %v741 = vld [vmem:[#allocation9 + $0x3c] sm:$0xf]
          %v758 = vunpack.c.l.b16 %v710
          %v759 = vunpack.c.l.b16 %v711
          %v760 = vunpack.c.l.b16 %v712
          %v761 = vunpack.c.l.b16 %v713
          %v762 = vunpack.c.l.b16 %v714
          %v763 = vunpack.c.l.b16 %v715
          %v764 = vunpack.c.l.b16 %v716
          %v765 = vunpack.c.l.b16 %v717
          %v766 = vunpack.c.l.b16 %v718
          %v767 = vunpack.c.l.b16 %v719
          %v768 = vunpack.c.l.b16 %v720
          %v769 = vunpack.c.l.b16 %v721
          %v770 = vunpack.c.l.b16 %v722
          %v771 = vunpack.c.l.b16 %v723
          %v772 = vunpack.c.l.b16 %v724
          %v773 = vunpack.c.l.b16 %v725
          %v774 = vpack.c.b16 %v759, %v758
          %v775 = vpack.c.b16 %v761, %v760
          %v776 = vpack.c.b16 %v763, %v762
          %v777 = vpack.c.b16 %v765, %v764
          %v778 = vpack.c.b16 %v767, %v766
          %v779 = vpack.c.b16 %v769, %v768
          %v780 = vpack.c.b16 %v771, %v770
          %v781 = vpack.c.b16 %v773, %v772
          %v806 = vunpack.c.l.b16 %v726
          %v807 = vunpack.c.l.b16 %v727
          %v808 = vunpack.c.l.b16 %v728
          %v809 = vunpack.c.l.b16 %v729
          %v810 = vunpack.c.l.b16 %v730
          %v811 = vunpack.c.l.b16 %v731
          %v812 = vunpack.c.l.b16 %v732
          %v813 = vunpack.c.l.b16 %v733
          %v814 = vunpack.c.l.b16 %v734
          %v815 = vunpack.c.l.b16 %v735
          %v816 = vunpack.c.l.b16 %v736
          %v817 = vunpack.c.l.b16 %v737
          %v818 = vunpack.c.l.b16 %v738
          %v819 = vunpack.c.l.b16 %v739
          %v820 = vunpack.c.l.b16 %v740
          %v821 = vunpack.c.l.b16 %v741
          %v822 = vpack.c.b16 %v807, %v806
          %v823 = vpack.c.b16 %v809, %v808
          %v824 = vpack.c.b16 %v811, %v810
          %v825 = vpack.c.b16 %v813, %v812
          %v826 = vpack.c.b16 %v815, %v814
          %v827 = vpack.c.b16 %v817, %v816
          %v828 = vpack.c.b16 %v819, %v818
          %v829 = vpack.c.b16 %v821, %v820
          %838 = vmatprep.subr.bf16.mxu0 0
          %839 = vmatpush1.bf16.msra.mxu0 %v822
          %840 = vmatprep.subr.bf16.mxu0 0
          %841 = vmatpush1.bf16.msra.mxu0 %v823
          %842 = vmatprep.subr.bf16.mxu0 0
          %843 = vmatpush1.bf16.msra.mxu0 %v824
          %844 = vmatprep.subr.bf16.mxu0 0
          %845 = vmatpush1.bf16.msra.mxu0 %v825
          %846 = vmatprep.subr.bf16.mxu0 0
          %847 = vmatpush1.bf16.msra.mxu0 %v826
          %848 = vmatprep.subr.bf16.mxu0 0
          %849 = vmatpush1.bf16.msra.mxu0 %v827
          %850 = vmatprep.subr.bf16.mxu0 0
          %851 = vmatpush1.bf16.msra.mxu0 %v828
          %852 = vmatprep.subr.bf16.mxu0 0
          %853 = vmatpush1.bf16.msra.mxu0 %v829
          %854 = vmatprep.subr.bf16.mxu0 0
          %855 = vmatpush1.bf16.msra.mxu0 0
          %856 = vmatprep.subr.bf16.mxu0 0
          %857 = vmatpush1.bf16.msra.mxu0 0
          %858 = vmatprep.subr.bf16.mxu0 0
          %859 = vmatpush1.bf16.msra.mxu0 0
          %860 = vmatprep.subr.bf16.mxu0 0
          %861 = vmatpush1.bf16.msra.mxu0 0
          %862 = vmatprep.subr.bf16.mxu0 0
          %863 = vmatpush1.bf16.msra.mxu0 0
          %864 = vmatprep.subr.bf16.mxu0 0
          %865 = vmatpush1.bf16.msra.mxu0 0
          %866 = vmatprep.subr.bf16.mxu0 0
          %867 = vmatpush1.bf16.msra.mxu0 0
          %868 = vmatprep.subr.bf16.mxu0 0
          %869 = vmatpush1.bf16.msra.mxu0 0
          %870 = vmatprep.mubr.bf16.mxu0 0
          %871 = vmatmul.mubr.bf16.gmra.mrb[0].mxu0 %v774
          %v872 = vpop.f32.mrb[0].mxu0
          %v873 = vadd.f32 0.0, %v872
          %v874 = vpop.f32.mrb[0].mxu0
          %v875 = vpop.f32.mrb[0].mxu0
          %v876 = vadd.f32 0.0, %v875
          %v877 = vpop.f32.mrb[0].mxu0
          %878 = vmatprep.mubr.bf16.mxu0 0
          %879 = vmatmul.mubr.bf16.gmra.mrb[0].mxu0 %v775
          %v880 = vpop.f32.mrb[0].mxu0
          %v881 = vadd.f32 0.0, %v880
          %v882 = vpop.f32.mrb[0].mxu0
          %v883 = vpop.f32.mrb[0].mxu0
          %v884 = vadd.f32 0.0, %v883
          %v885 = vpop.f32.mrb[0].mxu0
          %886 = vmatprep.mubr.bf16.mxu0 0
          %887 = vmatmul.mubr.bf16.gmra.mrb[0].mxu0 %v776
          %v888 = vpop.f32.mrb[0].mxu0
          %v889 = vadd.f32 0.0, %v888
          %v890 = vpop.f32.mrb[0].mxu0
          %v891 = vpop.f32.mrb[0].mxu0
          %v892 = vadd.f32 0.0, %v891
          %v893 = vpop.f32.mrb[0].mxu0
          %894 = vmatprep.mubr.bf16.mxu0 0
          %895 = vmatmul.mubr.bf16.gmra.mrb[0].mxu0 %v777
          %v896 = vpop.f32.mrb[0].mxu0
          %v897 = vadd.f32 0.0, %v896
          %v898 = vpop.f32.mrb[0].mxu0
          %v899 = vpop.f32.mrb[0].mxu0
          %v900 = vadd.f32 0.0, %v899
          %v901 = vpop.f32.mrb[0].mxu0
          %902 = vmatprep.mubr.bf16.mxu0 0
          %903 = vmatmul.mubr.bf16.gmra.mrb[0].mxu0 %v778
          %v904 = vpop.f32.mrb[0].mxu0
          %v905 = vadd.f32 0.0, %v904
          %v906 = vpop.f32.mrb[0].mxu0
          %v907 = vpop.f32.mrb[0].mxu0
          %v908 = vadd.f32 0.0, %v907
          %v909 = vpop.f32.mrb[0].mxu0
          %910 = vmatprep.mubr.bf16.mxu0 0
          %911 = vmatmul.mubr.bf16.gmra.mrb[0].mxu0 %v779
          %v912 = vpop.f32.mrb[0].mxu0
          %v913 = vadd.f32 0.0, %v912
          %v914 = vpop.f32.mrb[0].mxu0
          %v915 = vpop.f32.mrb[0].mxu0
          %v916 = vadd.f32 0.0, %v915
          %v917 = vpop.f32.mrb[0].mxu0
          %918 = vmatprep.mubr.bf16.mxu0 0
          %919 = vmatmul.mubr.bf16.gmra.mrb[0].mxu0 %v780
          %v920 = vpop.f32.mrb[0].mxu0
          %v921 = vadd.f32 0.0, %v920
          %v922 = vpop.f32.mrb[0].mxu0
          %v923 = vpop.f32.mrb[0].mxu0
          %v924 = vadd.f32 0.0, %v923
          %v925 = vpop.f32.mrb[0].mxu0
          %926 = vmatprep.mubr.bf16.mxu0 0
          %927 = vmatmul.mubr.bf16.gmra.mrb[0].mxu0 %v781
          %v928 = vpop.f32.mrb[0].mxu0
          %v929 = vadd.f32 0.0, %v928
          %v930 = vpop.f32.mrb[0].mxu0
          %v931 = vpop.f32.mrb[0].mxu0
          %v932 = vadd.f32 0.0, %v931
          %v933 = vpop.f32.mrb[0].mxu0
          %934 = vdwg.mxu0
          %v935 = vld [vmem:[#allocation4] sm:$0x1]
          %v937 = vlaneseq
          %v938 = vshrl.u32 %v937, 7
          %v939 = vsub.s32 0, %v938
          %v940 = vrot.slane %v935, %v939
          %v942 = vmul.f32 %v873, %v940
          %v943 = vmul.f32 %v876, %v940
          %v944 = vmul.f32 %v881, %v940
          %v945 = vmul.f32 %v884, %v940
          %v946 = vmul.f32 %v889, %v940
          %v947 = vmul.f32 %v892, %v940
          %v948 = vmul.f32 %v897, %v940
          %v949 = vmul.f32 %v900, %v940
          %v950 = vmul.f32 %v905, %v940
          %v951 = vmul.f32 %v908, %v940
          %v952 = vmul.f32 %v913, %v940
          %v953 = vmul.f32 %v916, %v940
          %v954 = vmul.f32 %v921, %v940
          %v955 = vmul.f32 %v924, %v940
          %v956 = vmul.f32 %v929, %v940
          %v957 = vmul.f32 %v932, %v940
          %v958 = vld [vmem:[#allocation5] sm:$0x1]
          %v960 = vlaneseq
          %v961 = vshrl.u32 %v960, 7
          %v962 = vsub.s32 0, %v961
          %v963 = vrot.slane %v958, %v962
          %v965 = vadd.f32 %v942, %v963
          %v966 = vadd.f32 %v943, %v963
          %v967 = vadd.f32 %v944, %v963
          %v968 = vadd.f32 %v945, %v963
          %v969 = vadd.f32 %v946, %v963
          %v970 = vadd.f32 %v947, %v963
          %v971 = vadd.f32 %v948, %v963
          %v972 = vadd.f32 %v949, %v963
          %v973 = vadd.f32 %v950, %v963
          %v974 = vadd.f32 %v951, %v963
          %v975 = vadd.f32 %v952, %v963
          %v976 = vadd.f32 %v953, %v963
          %v977 = vadd.f32 %v954, %v963
          %v978 = vadd.f32 %v955, %v963
          %v979 = vadd.f32 %v956, %v963
          %v980 = vadd.f32 %v957, %v963
          %v981 = vmax.f32 %v965, 0.0
          %v982 = vmax.f32 %v966, 0.0
          %v983 = vmax.f32 %v967, 0.0
          %v984 = vmax.f32 %v968, 0.0
          %v985 = vmax.f32 %v969, 0.0
          %v986 = vmax.f32 %v970, 0.0
          %v987 = vmax.f32 %v971, 0.0
          %v988 = vmax.f32 %v972, 0.0
          %v989 = vmax.f32 %v973, 0.0
          %v990 = vmax.f32 %v974, 0.0
          %v991 = vmax.f32 %v975, 0.0
          %v992 = vmax.f32 %v976, 0.0
          %v993 = vmax.f32 %v977, 0.0
          %v994 = vmax.f32 %v978, 0.0
          %v995 = vmax.f32 %v979, 0.0
          %v996 = vmax.f32 %v980, 0.0
          %v997 = vpack.c.bf16 %v982, %v981
          %v998 = vpack.c.bf16 %v984, %v983
          %v999 = vpack.c.bf16 %v986, %v985
          %v1000 = vpack.c.bf16 %v988, %v987
          %v1001 = vpack.c.bf16 %v990, %v989
          %v1002 = vpack.c.bf16 %v992, %v991
          %v1003 = vpack.c.bf16 %v994, %v993
          %v1004 = vpack.c.bf16 %v996, %v995
          %v1005 = vld [vmem:[#allocation11] sm:$0xf]
          %v1006 = vld [vmem:[#allocation11 + $0x4] sm:$0xf]
          %v1007 = vld [vmem:[#allocation11 + $0x8] sm:$0xf]
          %v1008 = vld [vmem:[#allocation11 + $0xc] sm:$0xf]
          %v1009 = vld [vmem:[#allocation11 + $0x10] sm:$0xf]
          %v1010 = vld [vmem:[#allocation11 + $0x14] sm:$0xf]
          %v1011 = vld [vmem:[#allocation11 + $0x18] sm:$0xf]
          %v1012 = vld [vmem:[#allocation11 + $0x1c] sm:$0xf]
          %v1013 = vld [vmem:[#allocation11 + $0x20] sm:$0xf]
          %v1014 = vld [vmem:[#allocation11 + $0x24] sm:$0xf]
          %v1015 = vld [vmem:[#allocation11 + $0x28] sm:$0xf]
          %v1016 = vld [vmem:[#allocation11 + $0x2c] sm:$0xf]
          %v1017 = vld [vmem:[#allocation11 + $0x30] sm:$0xf]
          %v1018 = vld [vmem:[#allocation11 + $0x34] sm:$0xf]
          %v1019 = vld [vmem:[#allocation11 + $0x38] sm:$0xf]
          %v1020 = vld [vmem:[#allocation11 + $0x3c] sm:$0xf]
          %v1021 = vld [vmem:[%s5] sm:$0x1]
          %v1023 = vlaneseq
          %v1024 = vshrl.u32 %v1023, 7
          %v1025 = vsub.s32 0, %v1024
          %v1026 = vrot.slane %v1021, %v1025
          %v1044 = vunpack.c.l.b16 %v1005
          %v1045 = vunpack.c.l.b16 %v1006
          %v1046 = vunpack.c.l.b16 %v1007
          %v1047 = vunpack.c.l.b16 %v1008
          %v1048 = vunpack.c.l.b16 %v1009
          %v1049 = vunpack.c.l.b16 %v1010
          %v1050 = vunpack.c.l.b16 %v1011
          %v1051 = vunpack.c.l.b16 %v1012
          %v1052 = vunpack.c.l.b16 %v1013
          %v1053 = vunpack.c.l.b16 %v1014
          %v1054 = vunpack.c.l.b16 %v1015
          %v1055 = vunpack.c.l.b16 %v1016
          %v1056 = vunpack.c.l.b16 %v1017
          %v1057 = vunpack.c.l.b16 %v1018
          %v1058 = vunpack.c.l.b16 %v1019
          %v1059 = vunpack.c.l.b16 %v1020
          %v1060 = vpack.c.b16 %v1045, %v1044
          %v1061 = vpack.c.b16 %v1047, %v1046
          %v1062 = vpack.c.b16 %v1049, %v1048
          %v1063 = vpack.c.b16 %v1051, %v1050
          %v1064 = vpack.c.b16 %v1053, %v1052
          %v1065 = vpack.c.b16 %v1055, %v1054
          %v1066 = vpack.c.b16 %v1057, %v1056
          %v1067 = vpack.c.b16 %v1059, %v1058
          %1076 = vmatprep.subr.bf16.mxu0 0
          %1077 = vmatpush1.bf16.msra.mxu0 %v1060
          %1078 = vmatprep.subr.bf16.mxu0 0
          %1079 = vmatpush1.bf16.msra.mxu0 %v1061
          %1080 = vmatprep.subr.bf16.mxu0 0
          %1081 = vmatpush1.bf16.msra.mxu0 %v1062
          %1082 = vmatprep.subr.bf16.mxu0 0
          %1083 = vmatpush1.bf16.msra.mxu0 %v1063
          %1084 = vmatprep.subr.bf16.mxu0 0
          %1085 = vmatpush1.bf16.msra.mxu0 %v1064
          %1086 = vmatprep.subr.bf16.mxu0 0
          %1087 = vmatpush1.bf16.msra.mxu0 %v1065
          %1088 = vmatprep.subr.bf16.mxu0 0
          %1089 = vmatpush1.bf16.msra.mxu0 %v1066
          %1090 = vmatprep.subr.bf16.mxu0 0
          %1091 = vmatpush1.bf16.msra.mxu0 %v1067
          %1092 = vmatprep.subr.bf16.mxu0 0
          %1093 = vmatpush1.bf16.msra.mxu0 0
          %1094 = vmatprep.subr.bf16.mxu0 0
          %1095 = vmatpush1.bf16.msra.mxu0 0
          %1096 = vmatprep.subr.bf16.mxu0 0
          %1097 = vmatpush1.bf16.msra.mxu0 0
          %1098 = vmatprep.subr.bf16.mxu0 0
          %1099 = vmatpush1.bf16.msra.mxu0 0
          %1100 = vmatprep.subr.bf16.mxu0 0
          %1101 = vmatpush1.bf16.msra.mxu0 0
          %1102 = vmatprep.subr.bf16.mxu0 0
          %1103 = vmatpush1.bf16.msra.mxu0 0
          %1104 = vmatprep.subr.bf16.mxu0 0
          %1105 = vmatpush1.bf16.msra.mxu0 0
          %1106 = vmatprep.subr.bf16.mxu0 0
          %1107 = vmatpush1.bf16.msra.mxu0 0
          %1108 = vmatprep.mubr.bf16.mxu0 0
          %1109 = vmatmul.mubr.bf16.gmra.mrb[0].mxu0 %v997
          %v1110 = vpop.f32.mrb[0].mxu0
          %v1111 = vadd.f32 %v1026, %v1110
          %v1112 = vpop.f32.mrb[0].mxu0
          %v1113 = vpop.f32.mrb[0].mxu0
          %v1114 = vadd.f32 %v1026, %v1113
          %v1115 = vpop.f32.mrb[0].mxu0
          %1116 = vmatprep.mubr.bf16.mxu0 0
          %1117 = vmatmul.mubr.bf16.gmra.mrb[0].mxu0 %v998
          %v1118 = vpop.f32.mrb[0].mxu0
          %v1119 = vadd.f32 %v1026, %v1118
          %v1120 = vpop.f32.mrb[0].mxu0
          %v1121 = vpop.f32.mrb[0].mxu0
          %v1122 = vadd.f32 %v1026, %v1121
          %v1123 = vpop.f32.mrb[0].mxu0
          %1124 = vmatprep.mubr.bf16.mxu0 0
          %1125 = vmatmul.mubr.bf16.gmra.mrb[0].mxu0 %v999
          %v1126 = vpop.f32.mrb[0].mxu0
          %v1127 = vadd.f32 %v1026, %v1126
          %v1128 = vpop.f32.mrb[0].mxu0
          %v1129 = vpop.f32.mrb[0].mxu0
          %v1130 = vadd.f32 %v1026, %v1129
          %v1131 = vpop.f32.mrb[0].mxu0
          %1132 = vmatprep.mubr.bf16.mxu0 0
          %1133 = vmatmul.mubr.bf16.gmra.mrb[0].mxu0 %v1000
          %v1134 = vpop.f32.mrb[0].mxu0
          %v1135 = vadd.f32 %v1026, %v1134
          %v1136 = vpop.f32.mrb[0].mxu0
          %v1137 = vpop.f32.mrb[0].mxu0
          %v1138 = vadd.f32 %v1026, %v1137
          %v1139 = vpop.f32.mrb[0].mxu0
          %1140 = vmatprep.mubr.bf16.mxu0 0
          %1141 = vmatmul.mubr.bf16.gmra.mrb[0].mxu0 %v1001
          %v1142 = vpop.f32.mrb[0].mxu0
          %v1143 = vadd.f32 %v1026, %v1142
          %v1144 = vpop.f32.mrb[0].mxu0
          %v1145 = vpop.f32.mrb[0].mxu0
          %v1146 = vadd.f32 %v1026, %v1145
          %v1147 = vpop.f32.mrb[0].mxu0
          %1148 = vmatprep.mubr.bf16.mxu0 0
          %1149 = vmatmul.mubr.bf16.gmra.mrb[0].mxu0 %v1002
          %v1150 = vpop.f32.mrb[0].mxu0
          %v1151 = vadd.f32 %v1026, %v1150
          %v1152 = vpop.f32.mrb[0].mxu0
          %v1153 = vpop.f32.mrb[0].mxu0
          %v1154 = vadd.f32 %v1026, %v1153
          %v1155 = vpop.f32.mrb[0].mxu0
          %1156 = vmatprep.mubr.bf16.mxu0 0
          %1157 = vmatmul.mubr.bf16.gmra.mrb[0].mxu0 %v1003
          %v1158 = vpop.f32.mrb[0].mxu0
          %v1159 = vadd.f32 %v1026, %v1158
          %v1160 = vpop.f32.mrb[0].mxu0
          %v1161 = vpop.f32.mrb[0].mxu0
          %v1162 = vadd.f32 %v1026, %v1161
          %v1163 = vpop.f32.mrb[0].mxu0
          %1164 = vmatprep.mubr.bf16.mxu0 0
          %1165 = vmatmul.mubr.bf16.gmra.mrb[0].mxu0 %v1004
          %v1166 = vpop.f32.mrb[0].mxu0
          %v1167 = vadd.f32 %v1026, %v1166
          %v1168 = vpop.f32.mrb[0].mxu0
          %v1169 = vpop.f32.mrb[0].mxu0
          %v1170 = vadd.f32 %v1026, %v1169
          %v1171 = vpop.f32.mrb[0].mxu0
          %1172 = vdwg.mxu0
          %v1173 = vmax.f32 %v1111, 0.0
          %v1174 = vmax.f32 %v1114, 0.0
          %v1175 = vmax.f32 %v1119, 0.0
          %v1176 = vmax.f32 %v1122, 0.0
          %v1177 = vmax.f32 %v1127, 0.0
          %v1178 = vmax.f32 %v1130, 0.0
          %v1179 = vmax.f32 %v1135, 0.0
          %v1180 = vmax.f32 %v1138, 0.0
          %v1181 = vmax.f32 %v1143, 0.0
          %v1182 = vmax.f32 %v1146, 0.0
          %v1183 = vmax.f32 %v1151, 0.0
          %v1184 = vmax.f32 %v1154, 0.0
          %v1185 = vmax.f32 %v1159, 0.0
          %v1186 = vmax.f32 %v1162, 0.0
          %v1187 = vmax.f32 %v1167, 0.0
          %v1188 = vmax.f32 %v1170, 0.0
          %v1189 = vpack.c.bf16 %v1174, %v1173
          %v1190 = vpack.c.bf16 %v1176, %v1175
          %v1191 = vpack.c.bf16 %v1178, %v1177
          %v1192 = vpack.c.bf16 %v1180, %v1179
          %v1193 = vpack.c.bf16 %v1182, %v1181
          %v1194 = vpack.c.bf16 %v1184, %v1183
          %v1195 = vpack.c.bf16 %v1186, %v1185
          %v1196 = vpack.c.bf16 %v1188, %v1187
          %v1197 = vld [vmem:[#allocation12] sm:$0xf]
          %v1198 = vld [vmem:[#allocation12 + $0x4] sm:$0xf]
          %v1199 = vld [vmem:[#allocation12 + $0x8] sm:$0xf]
          %v1200 = vld [vmem:[#allocation12 + $0xc] sm:$0xf]
          %v1201 = vld [vmem:[#allocation12 + $0x10] sm:$0xf]
          %v1202 = vld [vmem:[#allocation12 + $0x14] sm:$0xf]
          %v1203 = vld [vmem:[#allocation12 + $0x18] sm:$0xf]
          %v1204 = vld [vmem:[#allocation12 + $0x1c] sm:$0xf]
          %v1205 = vld [vmem:[#allocation12 + $0x20] sm:$0xf]
          %v1206 = vld [vmem:[#allocation12 + $0x24] sm:$0xf]
          %v1207 = vld [vmem:[#allocation12 + $0x28] sm:$0xf]
          %v1208 = vld [vmem:[#allocation12 + $0x2c] sm:$0xf]
          %v1209 = vld [vmem:[#allocation12 + $0x30] sm:$0xf]
          %v1210 = vld [vmem:[#allocation12 + $0x34] sm:$0xf]
          %v1211 = vld [vmem:[#allocation12 + $0x38] sm:$0xf]
          %v1212 = vld [vmem:[#allocation12 + $0x3c] sm:$0xf]
          %v1213 = vld [vmem:[%s7] sm:$0x1]
          %v1215 = vlaneseq
          %v1216 = vshrl.u32 %v1215, 7
          %v1217 = vsub.s32 0, %v1216
          %v1218 = vrot.slane %v1213, %v1217
          %v1236 = vunpack.c.l.b16 %v1197
          %v1237 = vunpack.c.l.b16 %v1198
          %v1238 = vunpack.c.l.b16 %v1199
          %v1239 = vunpack.c.l.b16 %v1200
          %v1240 = vunpack.c.l.b16 %v1201
          %v1241 = vunpack.c.l.b16 %v1202
          %v1242 = vunpack.c.l.b16 %v1203
          %v1243 = vunpack.c.l.b16 %v1204
          %v1244 = vunpack.c.l.b16 %v1205
          %v1245 = vunpack.c.l.b16 %v1206
          %v1246 = vunpack.c.l.b16 %v1207
          %v1247 = vunpack.c.l.b16 %v1208
          %v1248 = vunpack.c.l.b16 %v1209
          %v1249 = vunpack.c.l.b16 %v1210
          %v1250 = vunpack.c.l.b16 %v1211
          %v1251 = vunpack.c.l.b16 %v1212
          %v1252 = vpack.c.b16 %v1237, %v1236
          %v1253 = vpack.c.b16 %v1239, %v1238
          %v1254 = vpack.c.b16 %v1241, %v1240
          %v1255 = vpack.c.b16 %v1243, %v1242
          %v1256 = vpack.c.b16 %v1245, %v1244
          %v1257 = vpack.c.b16 %v1247, %v1246
          %v1258 = vpack.c.b16 %v1249, %v1248
          %v1259 = vpack.c.b16 %v1251, %v1250
          %1268 = vmatprep.subr.bf16.mxu0 0
          %1269 = vmatpush1.bf16.msra.mxu0 %v1252
          %1270 = vmatprep.subr.bf16.mxu0 0
          %1271 = vmatpush1.bf16.msra.mxu0 %v1253
          %1272 = vmatprep.subr.bf16.mxu0 0
          %1273 = vmatpush1.bf16.msra.mxu0 %v1254
          %1274 = vmatprep.subr.bf16.mxu0 0
          %1275 = vmatpush1.bf16.msra.mxu0 %v1255
          %1276 = vmatprep.subr.bf16.mxu0 0
          %1277 = vmatpush1.bf16.msra.mxu0 %v1256
          %1278 = vmatprep.subr.bf16.mxu0 0
          %1279 = vmatpush1.bf16.msra.mxu0 %v1257
          %1280 = vmatprep.subr.bf16.mxu0 0
          %1281 = vmatpush1.bf16.msra.mxu0 %v1258
          %1282 = vmatprep.subr.bf16.mxu0 0
          %1283 = vmatpush1.bf16.msra.mxu0 %v1259
          %1284 = vmatprep.subr.bf16.mxu0 0
          %1285 = vmatpush1.bf16.msra.mxu0 0
          %1286 = vmatprep.subr.bf16.mxu0 0
          %1287 = vmatpush1.bf16.msra.mxu0 0
          %1288 = vmatprep.subr.bf16.mxu0 0
          %1289 = vmatpush1.bf16.msra.mxu0 0
          %1290 = vmatprep.subr.bf16.mxu0 0
          %1291 = vmatpush1.bf16.msra.mxu0 0
          %1292 = vmatprep.subr.bf16.mxu0 0
          %1293 = vmatpush1.bf16.msra.mxu0 0
          %1294 = vmatprep.subr.bf16.mxu0 0
          %1295 = vmatpush1.bf16.msra.mxu0 0
          %1296 = vmatprep.subr.bf16.mxu0 0
          %1297 = vmatpush1.bf16.msra.mxu0 0
          %1298 = vmatprep.subr.bf16.mxu0 0
          %1299 = vmatpush1.bf16.msra.mxu0 0
          %1300 = vmatprep.mubr.bf16.mxu0 0
          %1301 = vmatmul.mubr.bf16.gmra.mrb[0].mxu0 %v1189
          %v1302 = vpop.f32.mrb[0].mxu0
          %v1303 = vadd.f32 %v1218, %v1302
          %v1304 = vpop.f32.mrb[0].mxu0
          %v1305 = vpop.f32.mrb[0].mxu0
          %v1306 = vadd.f32 %v1218, %v1305
          %v1307 = vpop.f32.mrb[0].mxu0
          %1308 = vmatprep.mubr.bf16.mxu0 0
          %1309 = vmatmul.mubr.bf16.gmra.mrb[0].mxu0 %v1190
          %v1310 = vpop.f32.mrb[0].mxu0
          %v1311 = vadd.f32 %v1218, %v1310
          %v1312 = vpop.f32.mrb[0].mxu0
          %v1313 = vpop.f32.mrb[0].mxu0
          %v1314 = vadd.f32 %v1218, %v1313
          %v1315 = vpop.f32.mrb[0].mxu0
          %1316 = vmatprep.mubr.bf16.mxu0 0
          %1317 = vmatmul.mubr.bf16.gmra.mrb[0].mxu0 %v1191
          %v1318 = vpop.f32.mrb[0].mxu0
          %v1319 = vadd.f32 %v1218, %v1318
          %v1320 = vpop.f32.mrb[0].mxu0
          %v1321 = vpop.f32.mrb[0].mxu0
          %v1322 = vadd.f32 %v1218, %v1321
          %v1323 = vpop.f32.mrb[0].mxu0
          %1324 = vmatprep.mubr.bf16.mxu0 0
          %1325 = vmatmul.mubr.bf16.gmra.mrb[0].mxu0 %v1192
          %v1326 = vpop.f32.mrb[0].mxu0
          %v1327 = vadd.f32 %v1218, %v1326
          %v1328 = vpop.f32.mrb[0].mxu0
          %v1329 = vpop.f32.mrb[0].mxu0
          %v1330 = vadd.f32 %v1218, %v1329
          %v1331 = vpop.f32.mrb[0].mxu0
          %1332 = vmatprep.mubr.bf16.mxu0 0
          %1333 = vmatmul.mubr.bf16.gmra.mrb[0].mxu0 %v1193
          %v1334 = vpop.f32.mrb[0].mxu0
          %v1335 = vadd.f32 %v1218, %v1334
          %v1336 = vpop.f32.mrb[0].mxu0
          %v1337 = vpop.f32.mrb[0].mxu0
          %v1338 = vadd.f32 %v1218, %v1337
          %v1339 = vpop.f32.mrb[0].mxu0
          %1340 = vmatprep.mubr.bf16.mxu0 0
          %1341 = vmatmul.mubr.bf16.gmra.mrb[0].mxu0 %v1194
          %v1342 = vpop.f32.mrb[0].mxu0
          %v1343 = vadd.f32 %v1218, %v1342
          %v1344 = vpop.f32.mrb[0].mxu0
          %v1345 = vpop.f32.mrb[0].mxu0
          %v1346 = vadd.f32 %v1218, %v1345
          %v1347 = vpop.f32.mrb[0].mxu0
          %1348 = vmatprep.mubr.bf16.mxu0 0
          %1349 = vmatmul.mubr.bf16.gmra.mrb[0].mxu0 %v1195
          %v1350 = vpop.f32.mrb[0].mxu0
          %v1351 = vadd.f32 %v1218, %v1350
          %v1352 = vpop.f32.mrb[0].mxu0
          %v1353 = vpop.f32.mrb[0].mxu0
          %v1354 = vadd.f32 %v1218, %v1353
          %v1355 = vpop.f32.mrb[0].mxu0
          %1356 = vmatprep.mubr.bf16.mxu0 0
          %1357 = vmatmul.mubr.bf16.gmra.mrb[0].mxu0 %v1196
          %v1358 = vpop.f32.mrb[0].mxu0
          %v1359 = vadd.f32 %v1218, %v1358
          %v1360 = vpop.f32.mrb[0].mxu0
          %v1361 = vpop.f32.mrb[0].mxu0
          %v1362 = vadd.f32 %v1218, %v1361
          %v1363 = vpop.f32.mrb[0].mxu0
          %1364 = vdwg.mxu0
          %1365 = vst [vmem:[%s381] sm:$0xff] %v1303
          %1366 = vst [vmem:[%s381 + $0x8] sm:$0xff] %v1306
          %1367 = vst [vmem:[%s381 + $0x10] sm:$0xff] %v1311
          %1368 = vst [vmem:[%s381 + $0x18] sm:$0xff] %v1314
          %1369 = vst [vmem:[%s381 + $0x20] sm:$0xff] %v1319
          %1370 = vst [vmem:[%s381 + $0x28] sm:$0xff] %v1322
          %1371 = vst [vmem:[%s381 + $0x30] sm:$0xff] %v1327
          %1372 = vst [vmem:[%s381 + $0x38] sm:$0xff] %v1330
          %1373 = vst [vmem:[%s381 + $0x40] sm:$0xff] %v1335
          %1374 = vst [vmem:[%s381 + $0x48] sm:$0xff] %v1338
          %1375 = vst [vmem:[%s381 + $0x50] sm:$0xff] %v1343
          %1376 = vst [vmem:[%s381 + $0x58] sm:$0xff] %v1346
          %1377 = vst [vmem:[%s381 + $0x60] sm:$0xff] %v1351
          %1378 = vst [vmem:[%s381 + $0x68] sm:$0xff] %v1354
          %1379 = vst [vmem:[%s381 + $0x70] sm:$0xff] %v1359
          %1380 = vst [vmem:[%s381 + $0x78] sm:$0xff] %v1362
        $region84: #{tpu_custom_call.1} parent=51 // pred_fallthru
          _
        %s1381 = sand.u32 %s222, 1
        %s1382 = scalar_lea.sflag [#allocation8], %s1381
        %s1383 = sand.u32 %s222, 1
        %s1384 = smul.addr %s1383, 128
        %s1385 = scalar_lea.vmem [#allocation14], %s1384
        // Predicated region
        $region85: #{tpu_custom_call.1} parent=51 // pred_check
          %p1386 = pneg %p232
        $region86: #{tpu_custom_call.1} parent=51 // pred_check_branch
          %1388 = sbr.rel (%p1386) target = $region88
        $region87: #{tpu_custom_call.1} parent=51 // pred_region
          %s1389 = smul.u32 %s31, %s32
          %s1390 = smul.u32 16, %s1389
          %s1392 = ssub.s32 2048, 2048
          %1393 = vsyncadd %s1382, %s1392
          %s1394 = smul.addr %s1390, 128
          %s1395 = scalar_lea.hbm %s8, %s1394
          %s1396 = sshll.u32 %s1385, 4
          %s1397 = int_to_ptr.vmem [resolvable:$true] %s1396
          %1402 = dma.vmem_to_hbm [thread:$0]  %s1397, 2048, %s1395, %s1382, 128, 128, 8
        $region88: #{tpu_custom_call.1} parent=51 // pred_fallthru
          _
      $region52: #{tpu_custom_call.1} parent=5 // pred_fallthru
        _
      %p1403 = scmp.le.s32.totalorder 2, %s22
      // Predicated region
      $region89: #{tpu_custom_call.1} parent=5 // pred_check
        %p1404 = pneg %p1403
      $region90: #{tpu_custom_call.1} parent=5 // pred_check_branch
        %1406 = sbr.rel (%p1404) target = $region92
      $region91: #{tpu_custom_call.1} parent=5 // pred_region
        %s1407 = ssub.s32 %s22, 2
        // Predicated region
        $region93: #{tpu_custom_call.1} parent=91 // pred_check
          %p1408 = pneg %p238
        $region94: #{tpu_custom_call.1} parent=91 // pred_check_branch
          %1410 = sbr.rel (%p1408) target = $region96
        $region95: #{tpu_custom_call.1} parent=91 // pred_region
          %s1411 = sand.u32 %s223, 1
          %s1412 = scalar_lea.sflag [#allocation8], %s1411
          %s1413 = sand.u32 %s223, 1
          %s1414 = smul.addr %s1413, 128
          %s1415 = scalar_lea.vmem [#allocation14], %s1414
          %1416 = dma.done %s1412, 2048
        $region96: #{tpu_custom_call.1} parent=91 // pred_fallthru
          _
      $region92: #{tpu_custom_call.1} parent=5 // pred_fallthru
        _
    $region6: #{tpu_custom_call.1} parent=1 // loop_footer
      %s26 = sadd.s32 1, %s22
    $region7: #{tpu_custom_call.1} parent=1 // loop_footer_branch
      %21 = sbr.rel target = $region3
    $region8: #{tpu_custom_call.1} parent=1 // loop_exit
      _
    %1417 = vsyncpa [#allocation7], 1
    %s1418 = scalar_lea.sflag [#allocation7], 1
    %1419 = vsyncpa %s1418, 1
    %1420 = vsyncpa [#allocation10], 1
    %1421 = vsyncpa [#allocation13], 1
    %1422 = vsyncpa [#allocation8], 1
    %s1423 = scalar_lea.sflag [#allocation8], 1
    %1424 = vsyncpa %s1423, 1

</llo_original>
